<compile_context>
chip_gen: v7x
topology: tpu7x:2x2x1
jax: 0.10.0
libtpu: 0.0.40
codegen_flags: <defaults>
</compile_context>

<pallas_src>
from functools import partial

import jax
import jax.numpy as jnp
from jax import lax
from jax.experimental import pallas as pl
from jax.experimental.pallas import tpu as pltpu


# ----------------------------------------------------------------------------
# Generation-aware defaults (scoped-VMEM budget, lane-tile width)
# ----------------------------------------------------------------------------

_TPU_DEFAULTS = None


def _tpu_defaults():
    """(vmem_limit_bytes, default lane tile).  v5e/v6e: 128 MiB VMEM per
    TensorCore -> fat tiles + 64 MiB scoped budget; v7x: 64 MiB -> keep the
    tile at 2048 and cap the scoped budget at 48 MiB."""
    global _TPU_DEFAULTS
    if _TPU_DEFAULTS is None:
        vmem_cap = None
        try:
            vmem_cap = getattr(pltpu.get_tpu_info(), "vmem_capacity_bytes", None)
        except Exception:
            vmem_cap = None
        if vmem_cap is None:
            _TPU_DEFAULTS = (32 * 1024 * 1024, 2048)       # safe fallback
        elif vmem_cap <= 80 * 1024 * 1024:
            _TPU_DEFAULTS = (48 * 1024 * 1024, 2048)       # v7x-class (64 MiB)
        else:
            _TPU_DEFAULTS = (64 * 1024 * 1024, 4096)       # v5e / v6e (128 MiB)
    return _TPU_DEFAULTS


def _round_up(x, m):
    return (x + m - 1) // m * m


def _col_tiling(n, target):
    """Tiling of the lane (point / ray) axis.  Pads to a 128-multiple so every
    store stays lane-dense (no vst.msk), and aims for >=2 grid programs so
    dimension_semantics=("parallel",) can use both v7x TensorCores."""
    target = max(128, _round_up(int(target), 128))
    n128 = _round_up(max(int(n), 1), 128)
    if n128 <= target:
        tn = _round_up(n128 // 2, 128) if n128 >= 256 else n128
    else:
        tn = target
    n_pad = _round_up(n128, tn)
    return n_pad, tn


def _pad_cols(x, n_pad):
    n = x.shape[-1]
    if n == n_pad:
        return x
    pad = [(0, 0)] * (x.ndim - 1) + [(0, n_pad - n)]
    return jnp.pad(x, pad)


# ----------------------------------------------------------------------------
# Shared in-kernel helpers (lane-dense (C, N) layout)
# ----------------------------------------------------------------------------

def _mm(W, h):
    # bf16 MXU edges (weights pre-cast in the wrappers), f32 accumulation.
    return jnp.dot(W.astype(jnp.bfloat16), h.astype(jnp.bfloat16),
                   preferred_element_type=jnp.float32)


def _implicit_core(x, Ws, bs, Wts):
    """ImplicitNetwork forward (Softplus beta=100, threshold=20) fused with the
    analytic gradient of output channel 0 w.r.t. the 3 input coords.
    Lane-dense layout: x is (3, N).  The forward exp() is reused for the
    softplus derivative (no second sigmoid) and the last-layer VJP is just
    row 0 of W_last (no one-hot seed / extra matmul)."""
    L = len(Ws)
    h = x
    dacts = []
    for l in range(L):
        p = _mm(Ws[l], h) + bs[l]
        if l < L - 1:
            z = 100.0 * p
            big = z > 20.0
            e = jnp.exp(jnp.minimum(z, 20.0))
            h = jnp.where(big, p, jnp.log1p(e) * 0.01)         # softplus(beta=100)
            # softplus'(beta=100) == sigmoid(100 p) == e / (1 + e)
            dacts.append(jnp.where(big, 1.0,
                                   e * pl.reciprocal(1.0 + e, approx=True)))
        else:
            h = p
    out = h                                      # (1 + F, N)
    g = Wts[L - 1][:, 0:1]                       # (H, 1) == W_last[0, :]^T
    for l in range(L - 2, -1, -1):
        g = g * dacts[l]
        g = _mm(Wts[l], g)
    return out, g                                # g: (3, N)


def _sphere_clamp(x, out, g_raw, bsphere, sphere_scale):
    sdf_raw = out[0:1, :]
    feat = out[1:, :]
    if bsphere <= 0.0:
        return sdf_raw, feat, g_raw
    xn = jnp.sqrt(jnp.sum(x * x, axis=0, keepdims=True))
    sphere_sdf = sphere_scale * (bsphere - xn)
    sdf = jnp.minimum(sdf_raw, sphere_sdf)
    grad_sphere = -sphere_scale * x / jnp.maximum(xn, 1e-12)
    # NOTE: sub-gradient at exact ties takes the network branch (<=).
    grads = jnp.where(sdf_raw <= sphere_sdf, g_raw, grad_sphere)
    return sdf, feat, grads


# ----------------------------------------------------------------------------
# Kernel 1: implicit SDF (fwd + grad + clamp) fused with RenderingNetwork
# ----------------------------------------------------------------------------

def _render_points_kernel(pts_ref, dirs_ref, *refs, bsphere, sphere_scale, n_feat):
    imp_W = [refs[i][...] for i in range(3)]
    imp_b = [refs[3 + i][...] for i in range(3)]
    imp_Wt = [refs[6 + i][...] for i in range(3)]
    r0, rb0, r1, rb1, r2, rb2 = [refs[9 + i][...] for i in range(6)]
    sdf_ref, rgb_ref, grads_ref, cat_ref = refs[15], refs[16], refs[17], refs[18]

    x = pts_ref[...]                                  # (3, Np)
    d = dirs_ref[...]                                 # (3, Np)
    out, g_raw = _implicit_core(x, imp_W, imp_b, imp_Wt)
    sdf, feat, grads = _sphere_clamp(x, out, g_raw, bsphere, sphere_scale)

    # RenderingNetwork (idr): stage cat([points, dirs, grads, feat]) into a
    # VMEM slab and hit layer 0 with ONE matmul (no 4x activation revisits).
    cat_ref[0:3, :] = x
    cat_ref[3:6, :] = d
    cat_ref[6:9, :] = grads
    cat_ref[9:9 + n_feat, :] = feat
    a = jnp.maximum(_mm(r0, cat_ref[...]) + rb0, 0.0)
    a = jnp.maximum(_mm(r1, a) + rb1, 0.0)
    rgb = jax.nn.sigmoid(_mm(r2, a) + rb2)            # (3, Np)

    sdf_ref[...] = sdf
    rgb_ref[...] = rgb
    grads_ref[...] = grads


def render_points_fused(points_cn, dirs_cn, imp_W, imp_b, rend_W, rend_b,
                        bsphere, sphere_scale, tile_n=None):
    _, n = points_cn.shape
    vmem_limit, tile_default = _tpu_defaults()
    n_pad, tn = _col_tiling(n, tile_n if tile_n is not None else tile_default)
    points_cn = _pad_cols(points_cn, n_pad)
    dirs_cn = _pad_cols(dirs_cn, n_pad)

    n_feat = rend_W[0].shape[1] - 9
    bf = lambda w: w.astype(jnp.bfloat16)             # hoisted MXU-edge cast
    imp_Wb = [bf(W) for W in imp_W]
    imp_Wtb = [bf(jnp.transpose(W)) for W in imp_W]
    wparams = (imp_Wb + list(imp_b) + imp_Wtb
               + [bf(rend_W[0]), rend_b[0], bf(rend_W[1]), rend_b[1],
                  bf(rend_W[2]), rend_b[2]])

    col = lambda c: pl.BlockSpec((c, tn), lambda i: (0, i))
    w_specs = [pl.BlockSpec(w.shape, lambda i: (0, 0)) for w in wparams]
    kernel = partial(_render_points_kernel, bsphere=bsphere,
                     sphere_scale=sphere_scale, n_feat=n_feat)

    sdf, rgb, grads = pl.pallas_call(
        kernel,
        out_shape=(jax.ShapeDtypeStruct((1, n_pad), jnp.float32),
                   jax.ShapeDtypeStruct((3, n_pad), jnp.float32),
                   jax.ShapeDtypeStruct((3, n_pad), jnp.float32)),
        grid=(n_pad // tn,),
        in_specs=[col(3), col(3)] + w_specs,
        out_specs=(col(1), col(3), col(3)),
        scratch_shapes=[pltpu.VMEM((9 + n_feat, tn), jnp.float32)],
        compiler_params=pltpu.CompilerParams(
            dimension_semantics=("parallel",), vmem_limit_bytes=vmem_limit),
    )(points_cn, dirs_cn, *wparams)
    return sdf[:, :n], rgb[:, :n], grads[:, :n]


# ----------------------------------------------------------------------------
# Kernel 2: implicit SDF (fwd + grad + clamp) fused with AttractionFieldNetwork
#           (also carries the eikonal points in the same batch)
# ----------------------------------------------------------------------------

def _implicit_attr_kernel(pts_ref, *refs, bsphere, sphere_scale, n_feat):
    imp_W = [refs[i][...] for i in range(3)]
    imp_b = [refs[3 + i][...] for i in range(3)]
    imp_Wt = [refs[6 + i][...] for i in range(3)]
    a0, ab0, a1, ab1, a2, ab2 = [refs[9 + i][...] for i in range(6)]
    sdf_ref, gradc_ref, gradr_ref, attr_ref, cat_ref = refs[15:20]

    x = pts_ref[...]                                  # (3, Np)
    out, g_raw = _implicit_core(x, imp_W, imp_b, imp_Wt)
    sdf, feat, grads = _sphere_clamp(x, out, g_raw, bsphere, sphere_scale)

    # AttractionFieldNetwork: cat([points, grads, feat]) -> single layer-0 matmul.
    cat_ref[0:3, :] = x
    cat_ref[3:6, :] = grads
    cat_ref[6:6 + n_feat, :] = feat
    h = jnp.maximum(_mm(a0, cat_ref[...]) + ab0, 0.0)
    h = jnp.maximum(_mm(a1, h) + ab1, 0.0)
    attr = _mm(a2, h) + ab2                           # (6, Np), no final act

    sdf_ref[...] = sdf
    gradc_ref[...] = grads
    gradr_ref[...] = g_raw
    attr_ref[...] = attr


def implicit_attraction_fused(points_cn, imp_W, imp_b, attr_W, attr_b,
                              bsphere, sphere_scale, tile_n=None):
    _, n = points_cn.shape
    vmem_limit, tile_default = _tpu_defaults()
    n_pad, tn = _col_tiling(n, tile_n if tile_n is not None else tile_default)
    points_cn = _pad_cols(points_cn, n_pad)

    n_feat = attr_W[0].shape[1] - 6
    bf = lambda w: w.astype(jnp.bfloat16)
    imp_Wb = [bf(W) for W in imp_W]
    imp_Wtb = [bf(jnp.transpose(W)) for W in imp_W]
    wparams = (imp_Wb + list(imp_b) + imp_Wtb
               + [bf(attr_W[0]), attr_b[0], bf(attr_W[1]), attr_b[1],
                  bf(attr_W[2]), attr_b[2]])

    col = lambda c: pl.BlockSpec((c, tn), lambda i: (0, i))
    w_specs = [pl.BlockSpec(w.shape, lambda i: (0, 0)) for w in wparams]
    kernel = partial(_implicit_attr_kernel, bsphere=bsphere,
                     sphere_scale=sphere_scale, n_feat=n_feat)

    sdf, gradc, gradr, attr = pl.pallas_call(
        kernel,
        out_shape=(jax.ShapeDtypeStruct((1, n_pad), jnp.float32),
                   jax.ShapeDtypeStruct((3, n_pad), jnp.float32),
                   jax.ShapeDtypeStruct((3, n_pad), jnp.float32),
                   jax.ShapeDtypeStruct((6, n_pad), jnp.float32)),
        grid=(n_pad // tn,),
        in_specs=[col(3)] + w_specs,
        out_specs=(col(1), col(3), col(3), col(6)),
        scratch_shapes=[pltpu.VMEM((6 + n_feat, tn), jnp.float32)],
        compiler_params=pltpu.CompilerParams(
            dimension_semantics=("parallel",), vmem_limit_bytes=vmem_limit),
    )(points_cn, *wparams)
    return sdf[:, :n], gradc[:, :n], gradr[:, :n], attr[:, :n]


# ----------------------------------------------------------------------------
# Kernel 3: volume rendering — rays on the 128-lane axis, samples on sublanes
# ----------------------------------------------------------------------------

def _volrender_kernel(z_ref, dr_ref, sdf_ref, rgb_ref, pts_ref, diffT_ref, triT_ref,
                      w_ref, rgbv_ref, depth_ref, xyz_ref, *, beta):
    z = z_ref[...]                                    # (S, Rt): rays on lanes
    sdf = sdf_ref[...]
    S = z.shape[0]
    inv_beta = 1.0 / beta

    # LaplaceDensity, cancellation-free branch form (== alpha*(0.5+0.5*sign*expm1)).
    e = jnp.exp(-jnp.abs(sdf) * inv_beta)
    density = inv_beta * jnp.where(sdf >= 0.0, 0.5 * e, 1.0 - 0.5 * e)

    # dists[i] = z[i+1] - z[i] (i < S-1), 1e10 at i = S-1; realised with a
    # constant (S,S) difference matrix on the MXU (hoisted in the wrapper).
    row = lax.broadcasted_iota(jnp.int32, z.shape, 0)
    d0 = jnp.dot(diffT_ref[...], z, preferred_element_type=jnp.float32)
    dists = jnp.where(row == S - 1, 1e10, d0)

    fe = dists * density
    # transmittance = exp(-sum_{k<i} fe_k), via strict-lower-triangular matmul.
    csum = jnp.dot(triT_ref[...], fe, preferred_element_type=jnp.float32)
    w = (1.0 - jnp.exp(-fe)) * jnp.exp(-csum)
    w_ref[...] = w

    ones_row = jnp.ones((1, S), jnp.float32)
    depth_ref[...] = jnp.dot(ones_row, w * dr_ref[...],
                             preferred_element_type=jnp.float32)
    rgbv_ref[...] = jnp.concatenate(
        [jnp.dot(ones_row, w * rgb_ref[c], preferred_element_type=jnp.float32)
         for c in range(3)], axis=0)
    xyz_ref[...] = jnp.concatenate(
        [jnp.dot(ones_row, w * pts_ref[c], preferred_element_type=jnp.float32)
         for c in range(3)], axis=0)


def volume_render(z_sr, dr_sr, sdf_sr, rgb_csr, pts_csr, beta, ray_tile=None):
    """Inputs in (S, R) / (3, S, R) layout.  Returns weights (R,S),
    rgb_values (R,3), depth (R,), xyz (R,3)."""
    S, R = z_sr.shape
    vmem_limit, _ = _tpu_defaults()
    target = ray_tile if ray_tile is not None else 1024
    r_pad, rt = _col_tiling(R, target)

    z_sr, dr_sr, sdf_sr = (_pad_cols(a, r_pad) for a in (z_sr, dr_sr, sdf_sr))
    rgb_csr, pts_csr = _pad_cols(rgb_csr, r_pad), _pad_cols(pts_csr, r_pad)

    # Constant (S,S) shift / strict-lower-triangular matrices (hoisted).
    i = jnp.arange(S)[:, None]
    k = jnp.arange(S)[None, :]
    diffT = (((k == i + 1).astype(jnp.float32) - (k == i).astype(jnp.float32))
             * (i < S - 1).astype(jnp.float32))
    triT = (k < i).astype(jnp.float32)

    sr = pl.BlockSpec((S, rt), lambda t: (0, t))
    plane = pl.BlockSpec((3, S, rt), lambda t: (0, 0, t))
    const = pl.BlockSpec((S, S), lambda t: (0, 0))
    rowspec = lambda c: pl.BlockSpec((c, rt), lambda t: (0, t))
    kernel = partial(_volrender_kernel, beta=float(beta))

    w_sr, rgbv, depth, xyz = pl.pallas_call(
        kernel,
        out_shape=(jax.ShapeDtypeStruct((S, r_pad), jnp.float32),
                   jax.ShapeDtypeStruct((3, r_pad), jnp.float32),
                   jax.ShapeDtypeStruct((1, r_pad), jnp.float32),
                   jax.ShapeDtypeStruct((3, r_pad), jnp.float32)),
        grid=(r_pad // rt,),
        in_specs=[sr, sr, sr, plane, plane, const, const],
        out_specs=(sr, rowspec(3), rowspec(1), rowspec(3)),
        compiler_params=pltpu.CompilerParams(
            dimension_semantics=("parallel",), vmem_limit_bytes=vmem_limit),
    )(z_sr, dr_sr, sdf_sr, rgb_csr, pts_csr, diffT, triT)
    return w_sr[:, :R].T, rgbv[:, :R].T, depth[0, :R], xyz[:, :R].T


# ----------------------------------------------------------------------------
# Kernel 4: generic lane-dense MLP (used only when the batch is large enough)
# ----------------------------------------------------------------------------

def _mlp_cn_kernel(x_ref, *refs, n_layers, hidden_act, final_act):
    out_ref = refs[-1]
    h = x_ref[...]
    for l in range(n_layers):
        h = _mm(refs[2 * l][...], h) + refs[2 * l + 1][...]
        if l < n_layers - 1:
            h = hidden_act(h)
    if final_act is not None:
        h = final_act(h)
    out_ref[...] = h


def mlp_forward_cn(x_cn, Ws, bs, hidden_act, final_act=None, tile_n=None):
    C, n = x_cn.shape
    vmem_limit, tile_default = _tpu_defaults()
    n_pad, tn = _col_tiling(n, tile_n if tile_n is not None else tile_default)
    x_cn = _pad_cols(x_cn, n_pad)
    Dout = Ws[-1].shape[0]
    in_specs = [pl.BlockSpec((C, tn), lambda i: (0, i))]
    flat = [x_cn]
    for W, b in zip(Ws, bs):
        Wb = W.astype(jnp.bfloat16)
        in_specs.append(pl.BlockSpec(Wb.shape, lambda i: (0, 0)))
        in_specs.append(pl.BlockSpec(b.shape, lambda i: (0, 0)))
        flat += [Wb, b]
    kernel = partial(_mlp_cn_kernel, n_layers=len(Ws), hidden_act=hidden_act,
                     final_act=final_act)
    out = pl.pallas_call(
        kernel,
        out_shape=jax.ShapeDtypeStruct((Dout, n_pad), jnp.float32),
        grid=(n_pad // tn,),
        in_specs=in_specs,
        out_specs=pl.BlockSpec((Dout, tn), lambda i: (0, i)),
        compiler_params=pltpu.CompilerParams(
            dimension_semantics=("parallel",), vmem_limit_bytes=vmem_limit),
    )(*flat)
    return out[:, :n]


def ffn_forward(latents, Ws, bs):
    """Global-junction FFN.  A tiny batch (n < 128) is pure launch overhead in
    Pallas, so run it in plain JAX; large junction sets use the Pallas MLP."""
    n = latents.shape[0]
    if n < 128:
        h = latents
        for l, (W, b) in enumerate(zip(Ws, bs)):
            h = h @ W.T + b[:, 0]
            if l < len(Ws) - 1:
                h = jax.nn.relu(h)
        return h
    return mlp_forward_cn(latents.T, Ws, bs, hidden_act=jax.nn.relu).T


# ----------------------------------------------------------------------------
# Plain-JAX glue (camera geometry, projections)
# ----------------------------------------------------------------------------

def get_camera_params(uv, pose, intrinsics):
    cam_loc = pose[:, :3, 3]
    fx = intrinsics[:, 0, 0][:, None]
    fy = intrinsics[:, 1, 1][:, None]
    cx = intrinsics[:, 0, 2][:, None]
    cy = intrinsics[:, 1, 2][:, None]
    sk = intrinsics[:, 0, 1][:, None]
    x_cam = uv[:, :, 0]
    y_cam = uv[:, :, 1]
    z = jnp.ones_like(x_cam)
    x_lift = (x_cam - cx + cy * sk / fy - sk * y_cam / fy) / fx * z
    y_lift = (y_cam - cy) / fy * z
    pts_cam = jnp.stack([x_lift, y_lift, z, jnp.ones_like(z)], axis=-1)
    world = jnp.einsum('bij,bnj->bni', pose, pts_cam)[:, :, :3]
    ray_dirs = world - cam_loc[:, None, :]
    return ray_dirs, cam_loc


def project2D(K, R, T, points3d):
    shape = points3d.shape
    X = points3d.reshape(-1, 3)
    x = K @ (R @ X.T + T)
    x = x.T
    x = x / x[:, -1:]
    return x.reshape(*shape)[..., :2]


# ----------------------------------------------------------------------------
# Deterministic parameter init (weight_norm is identity at init)
# ----------------------------------------------------------------------------

def geometric_linear(key, d_in, d_out, last, bias_val):
    if last:
        W = (jnp.sqrt(jnp.pi) / jnp.sqrt(float(d_in))
             + 1e-4 * jax.random.normal(key, (d_out, d_in)))
        b = -bias_val * jnp.ones((d_out, 1))
    else:
        W = jax.random.normal(key, (d_out, d_in)) * (jnp.sqrt(2.0) / jnp.sqrt(float(d_out)))
        b = jnp.zeros((d_out, 1))
    return W.astype(jnp.float32), b.astype(jnp.float32)


def plain_linear(key, d_in, d_out):
    # TODO(synk): torch default Linear init is Kaiming-uniform; deterministic scaled normal here.
    W = jax.random.normal(key, (d_out, d_in)) / jnp.sqrt(float(d_in))
    b = jnp.zeros((d_out, 1))
    return W.astype(jnp.float32), b.astype(jnp.float32)


def init_params(key, F, H, n_junc, Hj):
    ks = list(jax.random.split(key, 16))
    p = {}
    # ImplicitNetwork: dims = [3, H, H, 1+F], geometric init, bias=1.0
    dims_i = [3, H, H, 1 + F]
    p['imp_W'], p['imp_b'] = [], []
    for l in range(3):
        W, b = geometric_linear(ks.pop(), dims_i[l], dims_i[l + 1], l == 2, 1.0)
        p['imp_W'].append(W); p['imp_b'].append(b)
    # RenderingNetwork (idr): dims = [9+F, H, H, 3]
    dims_r = [9 + F, H, H, 3]
    p['rend_W'], p['rend_b'] = [], []
    for l in range(3):
        W, b = plain_linear(ks.pop(), dims_r[l], dims_r[l + 1])
        p['rend_W'].append(W); p['rend_b'].append(b)
    # AttractionFieldNetwork: dims = [6+F, H, H, 6], geometric init, bias=1.0
    dims_a = [6 + F, H, H, 6]
    p['attr_W'], p['attr_b'] = [], []
    for l in range(3):
        W, b = geometric_linear(ks.pop(), dims_a[l], dims_a[l + 1], l == 2, 1.0)
        p['attr_W'].append(W); p['attr_b'].append(b)
    # global-junction latents + ffn: [Hj, Hj, Hj, 3]
    p['latents'] = jax.random.normal(ks.pop(), (n_junc, Hj)).astype(jnp.float32)
    dims_f = [Hj, Hj, Hj, 3]
    p['ffn_W'], p['ffn_b'] = [], []
    for l in range(3):
        W, b = plain_linear(ks.pop(), dims_f[l], dims_f[l + 1])
        p['ffn_W'].append(W); p['ffn_b'].append(b)
    return p


# ----------------------------------------------------------------------------
# VolSDFNetwork.forward
# ----------------------------------------------------------------------------

def volsdf_forward(params, inputs, cfg, training=True, rng=None):
    R_s = cfg['scene_bounding_sphere']
    bsphere = 0.0 if cfg['white_bkgd'] else R_s
    S = cfg['n_samples']
    point_tile = cfg.get('point_tile', None)

    intrinsics, uv, pose = inputs['intrinsics'], inputs['uv'], inputs['pose']
    ray_dirs, cam_loc = get_camera_params(uv, pose, intrinsics)
    B, num_pixels, _ = ray_dirs.shape
    cam_loc_r = jnp.repeat(cam_loc[:, None, :], num_pixels, axis=1).reshape(-1, 3)
    ray_dirs_f = ray_dirs.reshape(-1, 3)
    n_rays = ray_dirs_f.shape[0]

    # TODO(synk): ErrorBoundSampler.get_z_vals (iterative SDF-bounded sampling)
    # replaced by deterministic uniform depth sampling.
    z = jnp.linspace(0.0, 2.0 * R_s, S, dtype=jnp.float32)
    z_vals = jnp.broadcast_to(z[None, :], (n_rays, S))
    z_samples_eik = jnp.mean(z_vals, axis=1, keepdims=True)

    rays_d = z_vals[:, :, None] * ray_dirs_f[:, None, :]
    depth_ratio = jnp.linalg.norm(rays_d, axis=-1)
    points = cam_loc_r[:, None, :] + rays_d                           # (R, S, 3)
    points_cn = points.reshape(-1, 3).T                               # (3, R*S)
    dirs_cn = jnp.broadcast_to(ray_dirs_f[:, None, :], (n_rays, S, 3)).reshape(-1, 3).T

    # Fused: implicit SDF fwd + analytic grad + sphere clamp + rendering MLP.
    sdf_cn, rgb_cn, grads_cn = render_points_fused(
        points_cn, dirs_cn, params['imp_W'], params['imp_b'],
        params['rend_W'], params['rend_b'], bsphere, 1.0, tile_n=point_tile)

    # Re-layout for the (S, rays-on-lanes) volume-rendering kernel.
    sdf_sr = sdf_cn.reshape(n_rays, S).T                              # (S, R)
    rgb_csr = rgb_cn.reshape(3, n_rays, S).transpose(0, 2, 1)         # (3, S, R)
    pts_csr = jnp.transpose(points, (2, 1, 0))                        # (3, S, R)

    weights, rgb_values, depth, xyz = volume_render(
        z_vals.T, depth_ratio.T, sdf_sr, rgb_csr, pts_csr, cfg['beta'])
    # white_bkgd=False -> no background compositing.

    output = {'points': points, 'rgb_values': rgb_values, 'depth': depth, 'xyz': xyz}

    # ---- Learning Attraction Fields ----
    points3d = xyz  # sum(weights[...,None] * points, 1)
    # TODO(synk): input['wireframe'] (GT line segments / vertices) not modeled.
    proj_mat = jnp.linalg.inv(pose[0])[:3]
    Rm, Tm = proj_mat[:, :3], proj_mat[:, 3:]
    K3 = intrinsics[0, :3, :3]

    R0 = points3d.shape[0]
    if training:
        n_eik = B * num_pixels
        eik_points = jax.random.uniform(rng, (n_eik, 3), minval=-R_s, maxval=R_s,
                                        dtype=jnp.float32)
        eik_near = (cam_loc_r[:, None, :]
                    + z_samples_eik[:, :, None] * ray_dirs_f[:, None, :]).reshape(-1, 3)
        # One fused pallas_call covers points3d + both eikonal point sets.
        batch_pts = jnp.concatenate([points3d, eik_points, eik_near], axis=0)
    else:
        batch_pts = points3d

    sdf_b, gradc_b, gradr_b, attr_b = implicit_attraction_fused(
        batch_pts.T, params['imp_W'], params['imp_b'],
        params['attr_W'], params['attr_b'], bsphere, 1.0)

    sdf3 = sdf_b[0, :R0]
    grads3 = gradc_b[:, :R0].T
    attr_out = attr_b[:, :R0].T                      # detach == identity

    offsets = attr_out[:, :6].reshape(-1, 2, 3)
    lines3d = points3d[:, None, :] + offsets
    lines2d = project2D(K3, Rm, Tm, lines3d)
    lines2d_calib = project2D(jnp.eye(3, dtype=jnp.float32), Rm, Tm, lines3d)

    line_ray_d, line_ray_o = get_camera_params(inputs['uv_proj'], pose, intrinsics)
    line_ray_d = line_ray_d.reshape(-1, 3)
    line_ray_o = jnp.tile(line_ray_o, (line_ray_d.shape[0], 1))
    denominator = jnp.sum(line_ray_d * grads3, axis=-1)
    denom_eps = jnp.where(denominator >= 0, 1e-6, -1e-6)
    t = jnp.sum((points3d - line_ray_o) * grads3, axis=-1) / (denominator + denom_eps)
    l3d = line_ray_o + line_ray_d * t[:, None]
    cr = jnp.cross(l3d - lines3d[:, 0], l3d - lines3d[:, 1])
    l3d_score = (jnp.linalg.norm(cr, axis=-1)
                 / jnp.linalg.norm(lines3d[:, 0] - lines3d[:, 1], axis=-1))

    if training:
        # config: dbscan_enabled=False, use_l3d=False -> junctions3d = lines3d.reshape(-1,3)
        # TODO(synk): sklearn DBSCAN clustering path has no Pallas/JAX equivalent.
        junctions3d = lines3d.reshape(-1, 3)
        junctions2d = project2D(K3, Rm, Tm, junctions3d)
        junctions2d_calib = project2D(jnp.eye(3, dtype=jnp.float32), Rm, Tm, junctions3d)
        junctions3d_global = ffn_forward(params['latents'], params['ffn_W'],
                                         params['ffn_b'])
        junctions2d_global = project2D(K3, Rm, Tm, junctions3d_global)
        junctions2d_global_calib = project2D(jnp.eye(3, dtype=jnp.float32), Rm, Tm,
                                             junctions3d_global)
        output.update({'j2d_local': junctions2d, 'j3d_local': junctions3d,
                       'j3d_global': junctions3d_global, 'j2d_global': junctions2d_global,
                       'j2d_local_calib': junctions2d_calib,
                       'j2d_global_calib': junctions2d_global_calib})

    output.update({'l3d': l3d, 'l3d_score': l3d_score, 'points3d': points3d,
                   'lines3d': lines3d, 'lines2d_calib': lines2d_calib,
                   'lines2d': lines2d, 'sdf': sdf3, 'K': K3})

    if training:
        # junction_eikonal=False; grad_theta is the UNclamped input gradient
        # (torch ImplicitNetwork.gradient), already computed in the batched call.
        output['grad_theta'] = gradr_b[:, R0:].T
    else:
        g = grads_cn
        nrm = g / jnp.linalg.norm(g, axis=0, keepdims=True)
        nrm = nrm.T.reshape(n_rays, S, 3)
        output['normal_map'] = jnp.sum(weights[:, :, None] * nrm, axis=1)

    return output


# ----------------------------------------------------------------------------
if __name__ == "__main__":
    F, H = 8, 32                 # feature_vector_size, MLP hidden width
    N_JUNC, HJ = 16, 32          # global_junctions: num_junctions, dim_hidden
    NUM_PIXELS, N_SAMPLES = 32, 16

    cfg = {'scene_bounding_sphere': 1.0, 'white_bkgd': False,
           'n_samples': N_SAMPLES, 'beta': 0.1,
           'point_tile': 256}    # small tile at test size to exercise the grid

    key = jax.random.PRNGKey(0)
    kp, ku, kup, ke = jax.random.split(key, 4)
    params = init_params(kp, F, H, N_JUNC, HJ)

    intrinsics = jnp.array([[[60.0, 0.0, 32.0, 0.0],
                             [0.0, 60.0, 32.0, 0.0],
                             [0.0, 0.0, 1.0, 0.0],
                             [0.0, 0.0, 0.0, 1.0]]], dtype=jnp.float32)
    pose = jnp.array([[[1.0, 0.0, 0.0, 0.2],
                       [0.0, 1.0, 0.0, -0.1],
                       [0.0, 0.0, 1.0, -2.0],
                       [0.0, 0.0, 0.0, 1.0]]], dtype=jnp.float32)
    uv = jax.random.uniform(ku, (1, NUM_PIXELS, 2), minval=8.0, maxval=56.0)
    uv_proj = jax.random.uniform(kup, (1, NUM_PIXELS, 2), minval=8.0, maxval=56.0)

    inputs = {'intrinsics': intrinsics, 'uv': uv, 'pose': pose, 'uv_proj': uv_proj}

    out = volsdf_forward(params, inputs, cfg, training=True, rng=ke)
    out = jax.tree_util.tree_map(jax.block_until_ready, out)

    # light sanity checks
    assert out['rgb_values'].shape == (NUM_PIXELS, 3)
    assert out['points'].shape == (NUM_PIXELS, N_SAMPLES, 3)
    assert out['lines3d'].shape == (NUM_PIXELS, 2, 3)
    assert out['lines2d'].shape == (NUM_PIXELS, 2, 2)
    assert out['j3d_global'].shape == (N_JUNC, 3)
    assert out['grad_theta'].shape == (2 * NUM_PIXELS, 3)
    assert out['sdf'].shape == (NUM_PIXELS,)
    assert out['depth'].shape == (NUM_PIXELS,)
    assert bool(jnp.all(jnp.isfinite(out['rgb_values'])))
    assert bool(jnp.all(jnp.isfinite(out['grad_theta'])))
    assert bool(jnp.all(jnp.isfinite(out['xyz'])))

    print("KERNEL_OK")
</pallas_src>

<mosaic_0001>
module attributes {stable_mosaic.version = 11 : i64} {
  func.func @_render_points_kernel(%arg0: i32, %arg1: memref<3x256xf32, #tpu.memory_space<vmem>>, %arg2: memref<3x256xf32, #tpu.memory_space<vmem>>, %arg3: memref<32x3xbf16, #tpu.memory_space<vmem>>, %arg4: memref<32x32xbf16, #tpu.memory_space<vmem>>, %arg5: memref<9x32xbf16, #tpu.memory_space<vmem>>, %arg6: memref<32x1xf32, #tpu.memory_space<vmem>>, %arg7: memref<32x1xf32, #tpu.memory_space<vmem>>, %arg8: memref<9x1xf32, #tpu.memory_space<vmem>>, %arg9: memref<3x32xbf16, #tpu.memory_space<vmem>>, %arg10: memref<32x32xbf16, #tpu.memory_space<vmem>>, %arg11: memref<32x9xbf16, #tpu.memory_space<vmem>>, %arg12: memref<32x17xbf16, #tpu.memory_space<vmem>>, %arg13: memref<32x1xf32, #tpu.memory_space<vmem>>, %arg14: memref<32x32xbf16, #tpu.memory_space<vmem>>, %arg15: memref<32x1xf32, #tpu.memory_space<vmem>>, %arg16: memref<3x32xbf16, #tpu.memory_space<vmem>>, %arg17: memref<3x1xf32, #tpu.memory_space<vmem>>, %arg18: memref<1x256xf32, #tpu.memory_space<vmem>>, %arg19: memref<3x256xf32, #tpu.memory_space<vmem>>, %arg20: memref<3x256xf32, #tpu.memory_space<vmem>>, %arg21: memref<17x256xf32, #tpu.memory_space<vmem>>) attributes {dimension_semantics = [#tpu.dimension_semantics<parallel>], iteration_bounds = array<i64: 2>, scalar_prefetch = 0 : i64, scratch_operands = 1 : i64, tpu.core_type = #tpu.core_type<tc>, window_params = [{transform_indices = @transform_0, window_bounds = array<i64: 3, 256>}, {transform_indices = @transform_1, window_bounds = array<i64: 3, 256>}, {pipeline_mode = #tpu.pipeline_mode<synchronous>, transform_indices = @transform_2, window_bounds = array<i64: 32, 3>}, {pipeline_mode = #tpu.pipeline_mode<synchronous>, transform_indices = @transform_3, window_bounds = array<i64: 32, 32>}, {pipeline_mode = #tpu.pipeline_mode<synchronous>, transform_indices = @transform_4, window_bounds = array<i64: 9, 32>}, {pipeline_mode = #tpu.pipeline_mode<synchronous>, transform_indices = @transform_5, window_bounds = array<i64: 32, 1>}, {pipeline_mode = #tpu.pipeline_mode<synchronous>, transform_indices = @transform_6, window_bounds = array<i64: 32, 1>}, {pipeline_mode = #tpu.pipeline_mode<synchronous>, transform_indices = @transform_7, window_bounds = array<i64: 9, 1>}, {pipeline_mode = #tpu.pipeline_mode<synchronous>, transform_indices = @transform_8, window_bounds = array<i64: 3, 32>}, {pipeline_mode = #tpu.pipeline_mode<synchronous>, transform_indices = @transform_9, window_bounds = array<i64: 32, 32>}, {pipeline_mode = #tpu.pipeline_mode<synchronous>, transform_indices = @transform_10, window_bounds = array<i64: 32, 9>}, {pipeline_mode = #tpu.pipeline_mode<synchronous>, transform_indices = @transform_11, window_bounds = array<i64: 32, 17>}, {pipeline_mode = #tpu.pipeline_mode<synchronous>, transform_indices = @transform_12, window_bounds = array<i64: 32, 1>}, {pipeline_mode = #tpu.pipeline_mode<synchronous>, transform_indices = @transform_13, window_bounds = array<i64: 32, 32>}, {pipeline_mode = #tpu.pipeline_mode<synchronous>, transform_indices = @transform_14, window_bounds = array<i64: 32, 1>}, {pipeline_mode = #tpu.pipeline_mode<synchronous>, transform_indices = @transform_15, window_bounds = array<i64: 3, 32>}, {pipeline_mode = #tpu.pipeline_mode<synchronous>, transform_indices = @transform_16, window_bounds = array<i64: 3, 1>}, {transform_indices = @transform_17, window_bounds = array<i64: 1, 256>}, {transform_indices = @transform_18, window_bounds = array<i64: 3, 256>}, {transform_indices = @transform_19, window_bounds = array<i64: 3, 256>}]} {
    %c0 = arith.constant 0 : index
    %c0_0 = arith.constant 0 : index
    %0 = vector.load %arg3[%c0, %c0_0] : memref<32x3xbf16, #tpu.memory_space<vmem>>, vector<32x3xbf16>
    %c0_1 = arith.constant 0 : index
    %c0_2 = arith.constant 0 : index
    %1 = vector.load %arg4[%c0_1, %c0_2] : memref<32x32xbf16, #tpu.memory_space<vmem>>, vector<32x32xbf16>
    %c0_3 = arith.constant 0 : index
    %c0_4 = arith.constant 0 : index
    %2 = vector.load %arg5[%c0_3, %c0_4] : memref<9x32xbf16, #tpu.memory_space<vmem>>, vector<9x32xbf16>
    %c0_5 = arith.constant 0 : index
    %c0_6 = arith.constant 0 : index
    %3 = vector.load %arg6[%c0_5, %c0_6] : memref<32x1xf32, #tpu.memory_space<vmem>>, vector<32x1xf32>
    %c0_7 = arith.constant 0 : index
    %c0_8 = arith.constant 0 : index
    %4 = vector.load %arg7[%c0_7, %c0_8] : memref<32x1xf32, #tpu.memory_space<vmem>>, vector<32x1xf32>
    %c0_9 = arith.constant 0 : index
    %c0_10 = arith.constant 0 : index
    %5 = vector.load %arg8[%c0_9, %c0_10] : memref<9x1xf32, #tpu.memory_space<vmem>>, vector<9x1xf32>
    %c0_11 = arith.constant 0 : index
    %c0_12 = arith.constant 0 : index
    %6 = vector.load %arg9[%c0_11, %c0_12] : memref<3x32xbf16, #tpu.memory_space<vmem>>, vector<3x32xbf16>
    %c0_13 = arith.constant 0 : index
    %c0_14 = arith.constant 0 : index
    %7 = vector.load %arg10[%c0_13, %c0_14] : memref<32x32xbf16, #tpu.memory_space<vmem>>, vector<32x32xbf16>
    %c0_15 = arith.constant 0 : index
    %c0_16 = arith.constant 0 : index
    %8 = vector.load %arg11[%c0_15, %c0_16] : memref<32x9xbf16, #tpu.memory_space<vmem>>, vector<32x9xbf16>
    %c0_17 = arith.constant 0 : index
    %c0_18 = arith.constant 0 : index
    %9 = vector.load %arg12[%c0_17, %c0_18] : memref<32x17xbf16, #tpu.memory_space<vmem>>, vector<32x17xbf16>
    %c0_19 = arith.constant 0 : index
    %c0_20 = arith.constant 0 : index
    %10 = vector.load %arg13[%c0_19, %c0_20] : memref<32x1xf32, #tpu.memory_space<vmem>>, vector<32x1xf32>
    %c0_21 = arith.constant 0 : index
    %c0_22 = arith.constant 0 : index
    %11 = vector.load %arg14[%c0_21, %c0_22] : memref<32x32xbf16, #tpu.memory_space<vmem>>, vector<32x32xbf16>
    %c0_23 = arith.constant 0 : index
    %c0_24 = arith.constant 0 : index
    %12 = vector.load %arg15[%c0_23, %c0_24] : memref<32x1xf32, #tpu.memory_space<vmem>>, vector<32x1xf32>
    %c0_25 = arith.constant 0 : index
    %c0_26 = arith.constant 0 : index
    %13 = vector.load %arg16[%c0_25, %c0_26] : memref<3x32xbf16, #tpu.memory_space<vmem>>, vector<3x32xbf16>
    %c0_27 = arith.constant 0 : index
    %c0_28 = arith.constant 0 : index
    %14 = vector.load %arg17[%c0_27, %c0_28] : memref<3x1xf32, #tpu.memory_space<vmem>>, vector<3x1xf32>
    %c0_29 = arith.constant 0 : index
    %c0_30 = arith.constant 0 : index
    %15 = vector.load %arg1[%c0_29, %c0_30] : memref<3x256xf32, #tpu.memory_space<vmem>>, vector<3x256xf32>
    %c0_31 = arith.constant 0 : index
    %c0_32 = arith.constant 0 : index
    %16 = vector.load %arg2[%c0_31, %c0_32] : memref<3x256xf32, #tpu.memory_space<vmem>>, vector<3x256xf32>
    %17 = arith.truncf %15 : vector<3x256xf32> to vector<3x256xbf16>
    %cst = arith.constant dense<0.000000e+00> : vector<32x256xf32>
    %18 = tpu.matmul %0, %17, %cst {dimension_numbers = #tpu.dot_dimension_numbers<[1], [0], [0], [1], [0, 0, 1, 1], [], []>} : vector<32x3xbf16>, vector<3x256xbf16>, vector<32x256xf32> -> vector<32x256xf32>
    %19 = vector.broadcast %3 : vector<32x1xf32> to vector<32x256xf32>
    %20 = arith.addf %18, %19 : vector<32x256xf32>
    %cst_33 = arith.constant 1.000000e+02 : f32
    %21 = vector.broadcast %cst_33 : f32 to vector<32x256xf32>
    %22 = arith.mulf %21, %20 : vector<32x256xf32>
    %cst_34 = arith.constant 2.000000e+01 : f32
    %23 = vector.broadcast %cst_34 : f32 to vector<32x256xf32>
    %24 = arith.cmpf ogt, %22, %23 : vector<32x256xf32>
    %cst_35 = arith.constant 2.000000e+01 : f32
    %25 = vector.broadcast %cst_35 : f32 to vector<32x256xf32>
    %26 = arith.minimumf %22, %25 : vector<32x256xf32>
    %27 = math.exp %26 : vector<32x256xf32>
    %28 = math.log1p %27 : vector<32x256xf32>
    %cst_36 = arith.constant 0.00999999977 : f32
    %29 = vector.broadcast %cst_36 : f32 to vector<32x256xf32>
    %30 = arith.mulf %28, %29 : vector<32x256xf32>
    %31 = arith.select %24, %20, %30 : vector<32x256xi1>, vector<32x256xf32>
    %cst_37 = arith.constant 1.000000e+00 : f32
    %32 = vector.broadcast %cst_37 : f32 to vector<32x256xf32>
    %33 = arith.addf %32, %27 : vector<32x256xf32>
    %34 = tpu.reciprocal %33 {approx = true} : vector<32x256xf32> -> vector<32x256xf32>
    %35 = arith.mulf %27, %34 : vector<32x256xf32>
    %cst_38 = arith.constant 1.000000e+00 : f32
    %36 = vector.broadcast %cst_38 : f32 to vector<32x256xf32>
    %37 = arith.select %24, %36, %35 : vector<32x256xi1>, vector<32x256xf32>
    %38 = arith.truncf %31 : vector<32x256xf32> to vector<32x256xbf16>
    %cst_39 = arith.constant dense<0.000000e+00> : vector<32x256xf32>
    %39 = tpu.matmul %1, %38, %cst_39 {dimension_numbers = #tpu.dot_dimension_numbers<[1], [0], [0], [1], [0, 0, 1, 1], [], []>} : vector<32x32xbf16>, vector<32x256xbf16>, vector<32x256xf32> -> vector<32x256xf32>
    %40 = vector.broadcast %4 : vector<32x1xf32> to vector<32x256xf32>
    %41 = arith.addf %39, %40 : vector<32x256xf32>
    %cst_40 = arith.constant 1.000000e+02 : f32
    %42 = vector.broadcast %cst_40 : f32 to vector<32x256xf32>
    %43 = arith.mulf %42, %41 : vector<32x256xf32>
    %cst_41 = arith.constant 2.000000e+01 : f32
    %44 = vector.broadcast %cst_41 : f32 to vector<32x256xf32>
    %45 = arith.cmpf ogt, %43, %44 : vector<32x256xf32>
    %cst_42 = arith.constant 2.000000e+01 : f32
    %46 = vector.broadcast %cst_42 : f32 to vector<32x256xf32>
    %47 = arith.minimumf %43, %46 : vector<32x256xf32>
    %48 = math.exp %47 : vector<32x256xf32>
    %49 = math.log1p %48 : vector<32x256xf32>
    %cst_43 = arith.constant 0.00999999977 : f32
    %50 = vector.broadcast %cst_43 : f32 to vector<32x256xf32>
    %51 = arith.mulf %49, %50 : vector<32x256xf32>
    %52 = arith.select %45, %41, %51 : vector<32x256xi1>, vector<32x256xf32>
    %cst_44 = arith.constant 1.000000e+00 : f32
    %53 = vector.broadcast %cst_44 : f32 to vector<32x256xf32>
    %54 = arith.addf %53, %48 : vector<32x256xf32>
    %55 = tpu.reciprocal %54 {approx = true} : vector<32x256xf32> -> vector<32x256xf32>
    %56 = arith.mulf %48, %55 : vector<32x256xf32>
    %cst_45 = arith.constant 1.000000e+00 : f32
    %57 = vector.broadcast %cst_45 : f32 to vector<32x256xf32>
    %58 = arith.select %45, %57, %56 : vector<32x256xi1>, vector<32x256xf32>
    %59 = arith.truncf %52 : vector<32x256xf32> to vector<32x256xbf16>
    %cst_46 = arith.constant dense<0.000000e+00> : vector<9x256xf32>
    %60 = tpu.matmul %2, %59, %cst_46 {dimension_numbers = #tpu.dot_dimension_numbers<[1], [0], [0], [1], [0, 0, 1, 1], [], []>} : vector<9x32xbf16>, vector<32x256xbf16>, vector<9x256xf32> -> vector<9x256xf32>
    %61 = vector.broadcast %5 : vector<9x1xf32> to vector<9x256xf32>
    %62 = arith.addf %60, %61 : vector<9x256xf32>
    %63 = vector.extract_strided_slice %8 {offsets = [0, 0], sizes = [32, 1], strides = [1, 1]} : vector<32x9xbf16> to vector<32x1xbf16>
    %64 = arith.extf %63 : vector<32x1xbf16> to vector<32x1xf32>
    %65 = vector.broadcast %64 : vector<32x1xf32> to vector<32x256xf32>
    %66 = arith.mulf %65, %58 : vector<32x256xf32>
    %67 = arith.truncf %66 : vector<32x256xf32> to vector<32x256xbf16>
    %cst_47 = arith.constant dense<0.000000e+00> : vector<32x256xf32>
    %68 = tpu.matmul %7, %67, %cst_47 {dimension_numbers = #tpu.dot_dimension_numbers<[1], [0], [0], [1], [0, 0, 1, 1], [], []>} : vector<32x32xbf16>, vector<32x256xbf16>, vector<32x256xf32> -> vector<32x256xf32>
    %69 = arith.mulf %68, %37 : vector<32x256xf32>
    %70 = arith.truncf %69 : vector<32x256xf32> to vector<32x256xbf16>
    %cst_48 = arith.constant dense<0.000000e+00> : vector<3x256xf32>
    %71 = tpu.matmul %6, %70, %cst_48 {dimension_numbers = #tpu.dot_dimension_numbers<[1], [0], [0], [1], [0, 0, 1, 1], [], []>} : vector<3x32xbf16>, vector<32x256xbf16>, vector<3x256xf32> -> vector<3x256xf32>
    %72 = vector.extract_strided_slice %62 {offsets = [0, 0], sizes = [1, 256], strides = [1, 1]} : vector<9x256xf32> to vector<1x256xf32>
    %73 = vector.extract_strided_slice %62 {offsets = [1, 0], sizes = [8, 256], strides = [1, 1]} : vector<9x256xf32> to vector<8x256xf32>
    %74 = arith.mulf %15, %15 : vector<3x256xf32>
    %cst_49 = arith.constant dense<0.000000e+00> : vector<256xf32>
    %75 = vector.multi_reduction <add>, %74, %cst_49 [0] : vector<3x256xf32> to vector<256xf32>
    %76 = vector.shape_cast %75 : vector<256xf32> to vector<1x256xf32>
    %77 = math.sqrt %76 : vector<1x256xf32>
    %cst_50 = arith.constant 1.000000e+00 : f32
    %78 = vector.broadcast %cst_50 : f32 to vector<1x256xf32>
    %79 = arith.subf %78, %77 : vector<1x256xf32>
    %cst_51 = arith.constant 1.000000e+00 : f32
    %80 = vector.broadcast %cst_51 : f32 to vector<1x256xf32>
    %81 = arith.mulf %80, %79 : vector<1x256xf32>
    %82 = arith.minimumf %72, %81 : vector<1x256xf32>
    %cst_52 = arith.constant -1.000000e+00 : f32
    %83 = vector.broadcast %cst_52 : f32 to vector<3x256xf32>
    %84 = arith.mulf %83, %15 : vector<3x256xf32>
    %cst_53 = arith.constant 9.99999996E-13 : f32
    %85 = vector.broadcast %cst_53 : f32 to vector<1x256xf32>
    %86 = arith.maximumf %77, %85 : vector<1x256xf32>
    %87 = vector.broadcast %86 : vector<1x256xf32> to vector<3x256xf32>
    %88 = arith.divf %84, %87 : vector<3x256xf32>
    %89 = arith.cmpf ole, %72, %81 : vector<1x256xf32>
    %90 = vector.shape_cast %89 : vector<1x256xi1> to vector<1x256xi1>
    %91 = vector.broadcast %90 : vector<1x256xi1> to vector<3x256xi1>
    %92 = arith.select %91, %71, %88 : vector<3x256xi1>, vector<3x256xf32>
    %c0_54 = arith.constant 0 : index
    %c0_55 = arith.constant 0 : index
    %93 = vector.load %arg21[%c0_54, %c0_55] : memref<17x256xf32, #tpu.memory_space<vmem>>, vector<3x256xf32>
    tpu.vector_store %arg21[%c0_54, %c0_55], %15 {strides = array<i32>} : memref<17x256xf32, #tpu.memory_space<vmem>>, vector<3x256xf32>,
    %c3 = arith.constant 3 : index
    %c0_56 = arith.constant 0 : index
    %94 = vector.load %arg21[%c3, %c0_56] : memref<17x256xf32, #tpu.memory_space<vmem>>, vector<3x256xf32>
    tpu.vector_store %arg21[%c3, %c0_56], %16 {strides = array<i32>} : memref<17x256xf32, #tpu.memory_space<vmem>>, vector<3x256xf32>,
    %c6 = arith.constant 6 : index
    %c0_57 = arith.constant 0 : index
    %95 = vector.load %arg21[%c6, %c0_57] : memref<17x256xf32, #tpu.memory_space<vmem>>, vector<3x256xf32>
    tpu.vector_store %arg21[%c6, %c0_57], %92 {strides = array<i32>} : memref<17x256xf32, #tpu.memory_space<vmem>>, vector<3x256xf32>,
    %c9 = arith.constant 9 : index
    %c0_58 = arith.constant 0 : index
    %96 = vector.load %arg21[%c9, %c0_58] : memref<17x256xf32, #tpu.memory_space<vmem>>, vector<8x256xf32>
    tpu.vector_store %arg21[%c9, %c0_58], %73 {strides = array<i32>} : memref<17x256xf32, #tpu.memory_space<vmem>>, vector<8x256xf32>,
    %c0_59 = arith.constant 0 : index
    %c0_60 = arith.constant 0 : index
    %97 = vector.load %arg21[%c0_59, %c0_60] : memref<17x256xf32, #tpu.memory_space<vmem>>, vector<17x256xf32>
    %98 = arith.truncf %97 : vector<17x256xf32> to vector<17x256xbf16>
    %cst_61 = arith.constant dense<0.000000e+00> : vector<32x256xf32>
    %99 = tpu.matmul %9, %98, %cst_61 {dimension_numbers = #tpu.dot_dimension_numbers<[1], [0], [0], [1], [0, 0, 1, 1], [], []>} : vector<32x17xbf16>, vector<17x256xbf16>, vector<32x256xf32> -> vector<32x256xf32>
    %100 = vector.broadcast %10 : vector<32x1xf32> to vector<32x256xf32>
    %101 = arith.addf %99, %100 : vector<32x256xf32>
    %cst_62 = arith.constant 0.000000e+00 : f32
    %102 = vector.broadcast %cst_62 : f32 to vector<32x256xf32>
    %103 = arith.maximumf %101, %102 : vector<32x256xf32>
    %104 = arith.truncf %103 : vector<32x256xf32> to vector<32x256xbf16>
    %cst_63 = arith.constant dense<0.000000e+00> : vector<32x256xf32>
    %105 = tpu.matmul %11, %104, %cst_63 {dimension_numbers = #tpu.dot_dimension_numbers<[1], [0], [0], [1], [0, 0, 1, 1], [], []>} : vector<32x32xbf16>, vector<32x256xbf16>, vector<32x256xf32> -> vector<32x256xf32>
    %106 = vector.broadcast %12 : vector<32x1xf32> to vector<32x256xf32>
    %107 = arith.addf %105, %106 : vector<32x256xf32>
    %cst_64 = arith.constant 0.000000e+00 : f32
    %108 = vector.broadcast %cst_64 : f32 to vector<32x256xf32>
    %109 = arith.maximumf %107, %108 : vector<32x256xf32>
    %110 = arith.truncf %109 : vector<32x256xf32> to vector<32x256xbf16>
    %cst_65 = arith.constant dense<0.000000e+00> : vector<3x256xf32>
    %111 = tpu.matmul %13, %110, %cst_65 {dimension_numbers = #tpu.dot_dimension_numbers<[1], [0], [0], [1], [0, 0, 1, 1], [], []>} : vector<3x32xbf16>, vector<32x256xbf16>, vector<3x256xf32> -> vector<3x256xf32>
    %112 = vector.broadcast %14 : vector<3x1xf32> to vector<3x256xf32>
    %113 = arith.addf %111, %112 : vector<3x256xf32>
    %114 = arith.negf %113 : vector<3x256xf32>
    %115 = math.exp %114 : vector<3x256xf32>
    %cst_66 = arith.constant 1.000000e+00 : f32
    %116 = vector.broadcast %cst_66 : f32 to vector<3x256xf32>
    %117 = arith.addf %116, %115 : vector<3x256xf32>
    %118 = arith.divf %116, %117 : vector<3x256xf32>
    %c0_67 = arith.constant 0 : index
    %c0_68 = arith.constant 0 : index
    %119 = vector.load %arg18[%c0_67, %c0_68] : memref<1x256xf32, #tpu.memory_space<vmem>>, vector<1x256xf32>
    tpu.vector_store %arg18[%c0_67, %c0_68], %82 {strides = array<i32>} : memref<1x256xf32, #tpu.memory_space<vmem>>, vector<1x256xf32>,
    %c0_69 = arith.constant 0 : index
    %c0_70 = arith.constant 0 : index
    %120 = vector.load %arg19[%c0_69, %c0_70] : memref<3x256xf32, #tpu.memory_space<vmem>>, vector<3x256xf32>
    tpu.vector_store %arg19[%c0_69, %c0_70], %118 {strides = array<i32>} : memref<3x256xf32, #tpu.memory_space<vmem>>, vector<3x256xf32>,
    %c0_71 = arith.constant 0 : index
    %c0_72 = arith.constant 0 : index
    %121 = vector.load %arg20[%c0_71, %c0_72] : memref<3x256xf32, #tpu.memory_space<vmem>>, vector<3x256xf32>
    tpu.vector_store %arg20[%c0_71, %c0_72], %92 {strides = array<i32>} : memref<3x256xf32, #tpu.memory_space<vmem>>, vector<3x256xf32>,
    return
  }
  func.func @transform_0(%arg0: i32) -> (i32, i32) {
    %c0_i32 = arith.constant 0 : i32
    %c0_i32_0 = arith.constant 0 : i32
    return %c0_i32, %arg0 : i32, i32
  }
  func.func @transform_1(%arg0: i32) -> (i32, i32) {
    %c0_i32 = arith.constant 0 : i32
    %c0_i32_0 = arith.constant 0 : i32
    return %c0_i32, %arg0 : i32, i32
  }
  func.func @transform_2(%arg0: i32) -> (i32, i32) {
    %c0_i32 = arith.constant 0 : i32
    %c0_i32_0 = arith.constant 0 : i32
    %c0_i32_1 = arith.constant 0 : i32
    return %c0_i32, %c0_i32_0 : i32, i32
  }
  func.func @transform_3(%arg0: i32) -> (i32, i32) {
    %c0_i32 = arith.constant 0 : i32
    %c0_i32_0 = arith.constant 0 : i32
    %c0_i32_1 = arith.constant 0 : i32
    return %c0_i32, %c0_i32_0 : i32, i32
  }
  func.func @transform_4(%arg0: i32) -> (i32, i32) {
    %c0_i32 = arith.constant 0 : i32
    %c0_i32_0 = arith.constant 0 : i32
    %c0_i32_1 = arith.constant 0 : i32
    return %c0_i32, %c0_i32_0 : i32, i32
  }
  func.func @transform_5(%arg0: i32) -> (i32, i32) {
    %c0_i32 = arith.constant 0 : i32
    %c0_i32_0 = arith.constant 0 : i32
    %c0_i32_1 = arith.constant 0 : i32
    return %c0_i32, %c0_i32_0 : i32, i32
  }
  func.func @transform_6(%arg0: i32) -> (i32, i32) {
    %c0_i32 = arith.constant 0 : i32
    %c0_i32_0 = arith.constant 0 : i32
    %c0_i32_1 = arith.constant 0 : i32
    return %c0_i32, %c0_i32_0 : i32, i32
  }
  func.func @transform_7(%arg0: i32) -> (i32, i32) {
    %c0_i32 = arith.constant 0 : i32
    %c0_i32_0 = arith.constant 0 : i32
    %c0_i32_1 = arith.constant 0 : i32
    return %c0_i32, %c0_i32_0 : i32, i32
  }
  func.func @transform_8(%arg0: i32) -> (i32, i32) {
    %c0_i32 = arith.constant 0 : i32
    %c0_i32_0 = arith.constant 0 : i32
    %c0_i32_1 = arith.constant 0 : i32
    return %c0_i32, %c0_i32_0 : i32, i32
  }
  func.func @transform_9(%arg0: i32) -> (i32, i32) {
    %c0_i32 = arith.constant 0 : i32
    %c0_i32_0 = arith.constant 0 : i32
    %c0_i32_1 = arith.constant 0 : i32
    return %c0_i32, %c0_i32_0 : i32, i32
  }
  func.func @transform_10(%arg0: i32) -> (i32, i32) {
    %c0_i32 = arith.constant 0 : i32
    %c0_i32_0 = arith.constant 0 : i32
    %c0_i32_1 = arith.constant 0 : i32
    return %c0_i32, %c0_i32_0 : i32, i32
  }
  func.func @transform_11(%arg0: i32) -> (i32, i32) {
    %c0_i32 = arith.constant 0 : i32
    %c0_i32_0 = arith.constant 0 : i32
    %c0_i32_1 = arith.constant 0 : i32
    return %c0_i32, %c0_i32_0 : i32, i32
  }
  func.func @transform_12(%arg0: i32) -> (i32, i32) {
    %c0_i32 = arith.constant 0 : i32
    %c0_i32_0 = arith.constant 0 : i32
    %c0_i32_1 = arith.constant 0 : i32
    return %c0_i32, %c0_i32_0 : i32, i32
  }
  func.func @transform_13(%arg0: i32) -> (i32, i32) {
    %c0_i32 = arith.constant 0 : i32
    %c0_i32_0 = arith.constant 0 : i32
    %c0_i32_1 = arith.constant 0 : i32
    return %c0_i32, %c0_i32_0 : i32, i32
  }
  func.func @transform_14(%arg0: i32) -> (i32, i32) {
    %c0_i32 = arith.constant 0 : i32
    %c0_i32_0 = arith.constant 0 : i32
    %c0_i32_1 = arith.constant 0 : i32
    return %c0_i32, %c0_i32_0 : i32, i32
  }
  func.func @transform_15(%arg0: i32) -> (i32, i32) {
    %c0_i32 = arith.constant 0 : i32
    %c0_i32_0 = arith.constant 0 : i32
    %c0_i32_1 = arith.constant 0 : i32
    return %c0_i32, %c0_i32_0 : i32, i32
  }
  func.func @transform_16(%arg0: i32) -> (i32, i32) {
    %c0_i32 = arith.constant 0 : i32
    %c0_i32_0 = arith.constant 0 : i32
    %c0_i32_1 = arith.constant 0 : i32
    return %c0_i32, %c0_i32_0 : i32, i32
  }
  func.func @transform_17(%arg0: i32) -> (i32, i32) {
    %c0_i32 = arith.constant 0 : i32
    %c0_i32_0 = arith.constant 0 : i32
    return %c0_i32, %arg0 : i32, i32
  }
  func.func @transform_18(%arg0: i32) -> (i32, i32) {
    %c0_i32 = arith.constant 0 : i32
    %c0_i32_0 = arith.constant 0 : i32
    return %c0_i32, %arg0 : i32, i32
  }
  func.func @transform_19(%arg0: i32) -> (i32, i32) {
    %c0_i32 = arith.constant 0 : i32
    %c0_i32_0 = arith.constant 0 : i32
    return %c0_i32, %arg0 : i32, i32
  }
}

</mosaic_0001>

<llo_original>
// kernel: tpu_custom_call.1
$region0: #{tpu_custom_call.1}
  #allocation0 [shape = 'u32[]', space=smem, size = 0x4, offset = 0x4, fixed_abs, tag = 'smem constant byte address 0x4 - core index']
  #allocation1 [shape = 'u32[144,128]{1,0:T(1,128)}', space=vmem, size = 0x12000, scoped, tag = 'internal scratch']
  #allocation2 [shape = 'f32[17,256]{1,0:T(8,128)}', space=vmem, size = 0x6000, scoped, tag = 'scratch operand']
  %s0 = inlined_call_operand.vmem [shape: f32[3,512], index: 0, kind: input, shape index: {}]
  %s1 = inlined_call_operand.vmem [shape: f32[3,512], index: 1, kind: input, shape index: {}]
  %s2 = inlined_call_operand.vmem [shape: bf16[32,3], index: 2, kind: input, shape index: {}]
  %s3 = inlined_call_operand.vmem [shape: bf16[32,32], index: 3, kind: input, shape index: {}]
  %s4 = inlined_call_operand.vmem [shape: bf16[9,32], index: 4, kind: input, shape index: {}]
  %s5 = inlined_call_operand.vmem [shape: f32[32,1], index: 5, kind: input, shape index: {}]
  %s6 = inlined_call_operand.vmem [shape: f32[32,1], index: 6, kind: input, shape index: {}]
  %s7 = inlined_call_operand.vmem [shape: f32[9,1], index: 7, kind: input, shape index: {}]
  %s8 = inlined_call_operand.vmem [shape: bf16[3,32], index: 8, kind: input, shape index: {}]
  %s9 = inlined_call_operand.vmem [shape: bf16[32,32], index: 9, kind: input, shape index: {}]
  %s10 = inlined_call_operand.vmem [shape: bf16[32,9], index: 10, kind: input, shape index: {}]
  %s11 = inlined_call_operand.vmem [shape: bf16[32,17], index: 11, kind: input, shape index: {}]
  %s12 = inlined_call_operand.vmem [shape: f32[32,1], index: 12, kind: input, shape index: {}]
  %s13 = inlined_call_operand.vmem [shape: bf16[32,32], index: 13, kind: input, shape index: {}]
  %s14 = inlined_call_operand.vmem [shape: f32[32,1], index: 14, kind: input, shape index: {}]
  %s15 = inlined_call_operand.vmem [shape: bf16[3,32], index: 15, kind: input, shape index: {}]
  %s16 = inlined_call_operand.vmem [shape: f32[3,1], index: 16, kind: input, shape index: {}]
  %s17 = inlined_call_operand.hbm [shape: f32[1,512], index: 17, kind: output, shape index: {0}]
  %s18 = inlined_call_operand.hbm [shape: f32[3,512], index: 18, kind: output, shape index: {1}]
  %s19 = inlined_call_operand.hbm [shape: f32[3,512], index: 19, kind: output, shape index: {2}]
  %20 = xla_tuple %s17, %s18, %s19
  %s21 = sld [smem:[#allocation0]]
  $region117: #{tpu_custom_call.1} parent=0
    _
  %s23 = ssub.s32 1, %s21
  %s24 = scalar_select 0, %s23, %s21
  $region1: #{tpu_custom_call.1} parent=0
    #allocation3 [shape = 'u8[2048]{0}', space=vmem, size = 0x800, scoped, tag = 'output window, operand 0']
    #allocation4 [shape = 's32[2]{0}', space=sflag, size = 0x8, scoped, tag = 'scoped memory for tpu_custom_call.1']
    #allocation5 [shape = 'u8[8192]{0}', space=vmem, size = 0x2000, scoped, tag = 'output window, operand 1']
    #allocation6 [shape = 's32[2]{0}', space=sflag, size = 0x8, scoped, tag = 'scoped memory for tpu_custom_call.1']
    #allocation7 [shape = 'u8[8192]{0}', space=vmem, size = 0x2000, scoped, tag = 'output window, operand 2']
    %25 = vsyncpa [#allocation4], 0
    %s26 = scalar_lea.sflag [#allocation4], 1
    %27 = vsyncpa %s26, 0
    %28 = vsyncpa [#allocation6], 0
    %s29 = scalar_lea.sflag [#allocation6], 1
    %30 = vsyncpa %s29, 0
    loop: start=0, step=1, limit=4
    $region2: #{tpu_custom_call.1} parent=1 // loop_pre_header
      _
    $region3: #{tpu_custom_call.1} parent=1 // loop_header
      %s32 = sphi 0, %s36
      %p33 = scmp.ge.s32.totalorder %s32, 4
      %s42 = sphi 0, %s44
      %s45 = sphi 0, %s42
      %s46 = sphi 0, %s45
      %s62 = sphi 0, %s46
      %s68 = sphi 0, %s70
      %s71 = sphi 0, %s68
      %s72 = sphi 0, %s71
      %s88 = sphi 0, %s72
      %s92 = sphi 0, %s92
      %s94 = sphi 0, %s92
      %s95 = sphi 0, %s94
      %s109 = sphi 0, %s95
      %s113 = sphi 0, %s113
      %s115 = sphi 0, %s113
      %s116 = sphi 0, %s115
      %s130 = sphi 0, %s116
      %s134 = sphi 0, %s134
      %s136 = sphi 0, %s134
      %s137 = sphi 0, %s136
      %s151 = sphi 0, %s137
      %s155 = sphi 0, %s155
      %s157 = sphi 0, %s155
      %s158 = sphi 0, %s157
      %s172 = sphi 0, %s158
      %s176 = sphi 0, %s176
      %s178 = sphi 0, %s176
      %s179 = sphi 0, %s178
      %s193 = sphi 0, %s179
      %s197 = sphi 0, %s197
      %s199 = sphi 0, %s197
      %s200 = sphi 0, %s199
      %s214 = sphi 0, %s200
      %s218 = sphi 0, %s218
      %s220 = sphi 0, %s218
      %s221 = sphi 0, %s220
      %s235 = sphi 0, %s221
      %s239 = sphi 0, %s239
      %s241 = sphi 0, %s239
      %s242 = sphi 0, %s241
      %s256 = sphi 0, %s242
      %s260 = sphi 0, %s260
      %s262 = sphi 0, %s260
      %s263 = sphi 0, %s262
      %s277 = sphi 0, %s263
      %s281 = sphi 0, %s281
      %s283 = sphi 0, %s281
      %s284 = sphi 0, %s283
      %s298 = sphi 0, %s284
      %s302 = sphi 0, %s302
      %s304 = sphi 0, %s302
      %s305 = sphi 0, %s304
      %s319 = sphi 0, %s305
      %s323 = sphi 0, %s323
      %s325 = sphi 0, %s323
      %s326 = sphi 0, %s325
      %s340 = sphi 0, %s326
      %s344 = sphi 0, %s344
      %s346 = sphi 0, %s344
      %s347 = sphi 0, %s346
      %s361 = sphi 0, %s347
      %s365 = sphi 0, %s365
      %s367 = sphi 0, %s365
      %s368 = sphi 0, %s367
      %s382 = sphi 0, %s368
      %s386 = sphi 0, %s386
      %s388 = sphi 0, %s386
      %s389 = sphi 0, %s388
      %s403 = sphi 0, %s389
      %s409 = sphi 0, %s411
      %s412 = sphi 0, %s409
      %s413 = sphi 0, %s412
      %s429 = sphi 0, %s413
      %s435 = sphi 0, %s437
      %s438 = sphi 0, %s435
      %s439 = sphi 0, %s438
      %s455 = sphi 0, %s439
      %s461 = sphi 0, %s463
      %s464 = sphi 0, %s461
      %s465 = sphi 0, %s464
      %s481 = sphi 0, %s465
    $region4: #{tpu_custom_call.1} parent=1 // loop_header_branch
      %35 = sbr.rel (%p33) target = $region8
    $region5: #{tpu_custom_call.1} parent=1 // loop_body
      %s37 = ssub.s32 %s32, 1
      %s38 = ssub.s32 %s32, 2
      %s39 = sadd.s32 %s32, 1
      %s40 = ssub.s32 %s32, %s39
      %p41 = scmp.eq.s32.totalorder %s40, 0
      %s43 = sadd.s32 %s42, 1
      %s44 = scalar_select %p41, %s42, %s43
      %p47 = pneg %p41
      %p48 = scmp.eq.s32.totalorder %s32, 1
      %p49 = por %p47, %p48
      %p50 = scmp.ne.s32.totalorder %s42, %s45
      %p51 = scmp.eq.s32.totalorder %s32, 0
      %p52 = por %p50, %p51
      %p53 = scmp.ne.s32.totalorder %s42, %s45
      %p54 = scmp.eq.s32.totalorder %s37, 1
      %p55 = por %p53, %p54
      %p56 = scmp.ne.s32.totalorder %s45, %s46
      %p57 = scmp.eq.s32.totalorder %s37, 0
      %p58 = por %p56, %p57
      %p59 = scmp.ne.s32.totalorder %s45, %s46
      %p60 = scmp.eq.s32.totalorder %s38, 1
      %p61 = por %p59, %p60
      %p63 = scmp.ne.s32.totalorder %s46, %s62
      %p64 = scmp.eq.s32.totalorder %s38, 0
      %p65 = por %p63, %p64
      %s66 = ssub.s32 %s32, %s39
      %p67 = scmp.eq.s32.totalorder %s66, 0
      %s69 = sadd.s32 %s68, 1
      %s70 = scalar_select %p67, %s68, %s69
      %p73 = pneg %p67
      %p74 = scmp.eq.s32.totalorder %s32, 1
      %p75 = por %p73, %p74
      %p76 = scmp.ne.s32.totalorder %s68, %s71
      %p77 = scmp.eq.s32.totalorder %s32, 0
      %p78 = por %p76, %p77
      %p79 = scmp.ne.s32.totalorder %s68, %s71
      %p80 = scmp.eq.s32.totalorder %s37, 1
      %p81 = por %p79, %p80
      %p82 = scmp.ne.s32.totalorder %s71, %s72
      %p83 = scmp.eq.s32.totalorder %s37, 0
      %p84 = por %p82, %p83
      %p85 = scmp.ne.s32.totalorder %s71, %s72
      %p86 = scmp.eq.s32.totalorder %s38, 1
      %p87 = por %p85, %p86
      %p89 = scmp.ne.s32.totalorder %s72, %s88
      %p90 = scmp.eq.s32.totalorder %s38, 0
      %p91 = por %p89, %p90
      %s93 = sadd.s32 %s92, 1
      %p96 = scmp.eq.s32.totalorder %s32, 1
      %p97 = scmp.ne.s32.totalorder %s92, %s94
      %p98 = scmp.eq.s32.totalorder %s32, 0
      %p99 = por %p97, %p98
      %p100 = scmp.ne.s32.totalorder %s92, %s94
      %p101 = scmp.eq.s32.totalorder %s37, 1
      %p102 = por %p100, %p101
      %p103 = scmp.ne.s32.totalorder %s94, %s95
      %p104 = scmp.eq.s32.totalorder %s37, 0
      %p105 = por %p103, %p104
      %p106 = scmp.ne.s32.totalorder %s94, %s95
      %p107 = scmp.eq.s32.totalorder %s38, 1
      %p108 = por %p106, %p107
      %p110 = scmp.ne.s32.totalorder %s95, %s109
      %p111 = scmp.eq.s32.totalorder %s38, 0
      %p112 = por %p110, %p111
      %s114 = sadd.s32 %s113, 1
      %p117 = scmp.eq.s32.totalorder %s32, 1
      %p118 = scmp.ne.s32.totalorder %s113, %s115
      %p119 = scmp.eq.s32.totalorder %s32, 0
      %p120 = por %p118, %p119
      %p121 = scmp.ne.s32.totalorder %s113, %s115
      %p122 = scmp.eq.s32.totalorder %s37, 1
      %p123 = por %p121, %p122
      %p124 = scmp.ne.s32.totalorder %s115, %s116
      %p125 = scmp.eq.s32.totalorder %s37, 0
      %p126 = por %p124, %p125
      %p127 = scmp.ne.s32.totalorder %s115, %s116
      %p128 = scmp.eq.s32.totalorder %s38, 1
      %p129 = por %p127, %p128
      %p131 = scmp.ne.s32.totalorder %s116, %s130
      %p132 = scmp.eq.s32.totalorder %s38, 0
      %p133 = por %p131, %p132
      %s135 = sadd.s32 %s134, 1
      %p138 = scmp.eq.s32.totalorder %s32, 1
      %p139 = scmp.ne.s32.totalorder %s134, %s136
      %p140 = scmp.eq.s32.totalorder %s32, 0
      %p141 = por %p139, %p140
      %p142 = scmp.ne.s32.totalorder %s134, %s136
      %p143 = scmp.eq.s32.totalorder %s37, 1
      %p144 = por %p142, %p143
      %p145 = scmp.ne.s32.totalorder %s136, %s137
      %p146 = scmp.eq.s32.totalorder %s37, 0
      %p147 = por %p145, %p146
      %p148 = scmp.ne.s32.totalorder %s136, %s137
      %p149 = scmp.eq.s32.totalorder %s38, 1
      %p150 = por %p148, %p149
      %p152 = scmp.ne.s32.totalorder %s137, %s151
      %p153 = scmp.eq.s32.totalorder %s38, 0
      %p154 = por %p152, %p153
      %s156 = sadd.s32 %s155, 1
      %p159 = scmp.eq.s32.totalorder %s32, 1
      %p160 = scmp.ne.s32.totalorder %s155, %s157
      %p161 = scmp.eq.s32.totalorder %s32, 0
      %p162 = por %p160, %p161
      %p163 = scmp.ne.s32.totalorder %s155, %s157
      %p164 = scmp.eq.s32.totalorder %s37, 1
      %p165 = por %p163, %p164
      %p166 = scmp.ne.s32.totalorder %s157, %s158
      %p167 = scmp.eq.s32.totalorder %s37, 0
      %p168 = por %p166, %p167
      %p169 = scmp.ne.s32.totalorder %s157, %s158
      %p170 = scmp.eq.s32.totalorder %s38, 1
      %p171 = por %p169, %p170
      %p173 = scmp.ne.s32.totalorder %s158, %s172
      %p174 = scmp.eq.s32.totalorder %s38, 0
      %p175 = por %p173, %p174
      %s177 = sadd.s32 %s176, 1
      %p180 = scmp.eq.s32.totalorder %s32, 1
      %p181 = scmp.ne.s32.totalorder %s176, %s178
      %p182 = scmp.eq.s32.totalorder %s32, 0
      %p183 = por %p181, %p182
      %p184 = scmp.ne.s32.totalorder %s176, %s178
      %p185 = scmp.eq.s32.totalorder %s37, 1
      %p186 = por %p184, %p185
      %p187 = scmp.ne.s32.totalorder %s178, %s179
      %p188 = scmp.eq.s32.totalorder %s37, 0
      %p189 = por %p187, %p188
      %p190 = scmp.ne.s32.totalorder %s178, %s179
      %p191 = scmp.eq.s32.totalorder %s38, 1
      %p192 = por %p190, %p191
      %p194 = scmp.ne.s32.totalorder %s179, %s193
      %p195 = scmp.eq.s32.totalorder %s38, 0
      %p196 = por %p194, %p195
      %s198 = sadd.s32 %s197, 1
      %p201 = scmp.eq.s32.totalorder %s32, 1
      %p202 = scmp.ne.s32.totalorder %s197, %s199
      %p203 = scmp.eq.s32.totalorder %s32, 0
      %p204 = por %p202, %p203
      %p205 = scmp.ne.s32.totalorder %s197, %s199
      %p206 = scmp.eq.s32.totalorder %s37, 1
      %p207 = por %p205, %p206
      %p208 = scmp.ne.s32.totalorder %s199, %s200
      %p209 = scmp.eq.s32.totalorder %s37, 0
      %p210 = por %p208, %p209
      %p211 = scmp.ne.s32.totalorder %s199, %s200
      %p212 = scmp.eq.s32.totalorder %s38, 1
      %p213 = por %p211, %p212
      %p215 = scmp.ne.s32.totalorder %s200, %s214
      %p216 = scmp.eq.s32.totalorder %s38, 0
      %p217 = por %p215, %p216
      %s219 = sadd.s32 %s218, 1
      %p222 = scmp.eq.s32.totalorder %s32, 1
      %p223 = scmp.ne.s32.totalorder %s218, %s220
      %p224 = scmp.eq.s32.totalorder %s32, 0
      %p225 = por %p223, %p224
      %p226 = scmp.ne.s32.totalorder %s218, %s220
      %p227 = scmp.eq.s32.totalorder %s37, 1
      %p228 = por %p226, %p227
      %p229 = scmp.ne.s32.totalorder %s220, %s221
      %p230 = scmp.eq.s32.totalorder %s37, 0
      %p231 = por %p229, %p230
      %p232 = scmp.ne.s32.totalorder %s220, %s221
      %p233 = scmp.eq.s32.totalorder %s38, 1
      %p234 = por %p232, %p233
      %p236 = scmp.ne.s32.totalorder %s221, %s235
      %p237 = scmp.eq.s32.totalorder %s38, 0
      %p238 = por %p236, %p237
      %s240 = sadd.s32 %s239, 1
      %p243 = scmp.eq.s32.totalorder %s32, 1
      %p244 = scmp.ne.s32.totalorder %s239, %s241
      %p245 = scmp.eq.s32.totalorder %s32, 0
      %p246 = por %p244, %p245
      %p247 = scmp.ne.s32.totalorder %s239, %s241
      %p248 = scmp.eq.s32.totalorder %s37, 1
      %p249 = por %p247, %p248
      %p250 = scmp.ne.s32.totalorder %s241, %s242
      %p251 = scmp.eq.s32.totalorder %s37, 0
      %p252 = por %p250, %p251
      %p253 = scmp.ne.s32.totalorder %s241, %s242
      %p254 = scmp.eq.s32.totalorder %s38, 1
      %p255 = por %p253, %p254
      %p257 = scmp.ne.s32.totalorder %s242, %s256
      %p258 = scmp.eq.s32.totalorder %s38, 0
      %p259 = por %p257, %p258
      %s261 = sadd.s32 %s260, 1
      %p264 = scmp.eq.s32.totalorder %s32, 1
      %p265 = scmp.ne.s32.totalorder %s260, %s262
      %p266 = scmp.eq.s32.totalorder %s32, 0
      %p267 = por %p265, %p266
      %p268 = scmp.ne.s32.totalorder %s260, %s262
      %p269 = scmp.eq.s32.totalorder %s37, 1
      %p270 = por %p268, %p269
      %p271 = scmp.ne.s32.totalorder %s262, %s263
      %p272 = scmp.eq.s32.totalorder %s37, 0
      %p273 = por %p271, %p272
      %p274 = scmp.ne.s32.totalorder %s262, %s263
      %p275 = scmp.eq.s32.totalorder %s38, 1
      %p276 = por %p274, %p275
      %p278 = scmp.ne.s32.totalorder %s263, %s277
      %p279 = scmp.eq.s32.totalorder %s38, 0
      %p280 = por %p278, %p279
      %s282 = sadd.s32 %s281, 1
      %p285 = scmp.eq.s32.totalorder %s32, 1
      %p286 = scmp.ne.s32.totalorder %s281, %s283
      %p287 = scmp.eq.s32.totalorder %s32, 0
      %p288 = por %p286, %p287
      %p289 = scmp.ne.s32.totalorder %s281, %s283
      %p290 = scmp.eq.s32.totalorder %s37, 1
      %p291 = por %p289, %p290
      %p292 = scmp.ne.s32.totalorder %s283, %s284
      %p293 = scmp.eq.s32.totalorder %s37, 0
      %p294 = por %p292, %p293
      %p295 = scmp.ne.s32.totalorder %s283, %s284
      %p296 = scmp.eq.s32.totalorder %s38, 1
      %p297 = por %p295, %p296
      %p299 = scmp.ne.s32.totalorder %s284, %s298
      %p300 = scmp.eq.s32.totalorder %s38, 0
      %p301 = por %p299, %p300
      %s303 = sadd.s32 %s302, 1
      %p306 = scmp.eq.s32.totalorder %s32, 1
      %p307 = scmp.ne.s32.totalorder %s302, %s304
      %p308 = scmp.eq.s32.totalorder %s32, 0
      %p309 = por %p307, %p308
      %p310 = scmp.ne.s32.totalorder %s302, %s304
      %p311 = scmp.eq.s32.totalorder %s37, 1
      %p312 = por %p310, %p311
      %p313 = scmp.ne.s32.totalorder %s304, %s305
      %p314 = scmp.eq.s32.totalorder %s37, 0
      %p315 = por %p313, %p314
      %p316 = scmp.ne.s32.totalorder %s304, %s305
      %p317 = scmp.eq.s32.totalorder %s38, 1
      %p318 = por %p316, %p317
      %p320 = scmp.ne.s32.totalorder %s305, %s319
      %p321 = scmp.eq.s32.totalorder %s38, 0
      %p322 = por %p320, %p321
      %s324 = sadd.s32 %s323, 1
      %p327 = scmp.eq.s32.totalorder %s32, 1
      %p328 = scmp.ne.s32.totalorder %s323, %s325
      %p329 = scmp.eq.s32.totalorder %s32, 0
      %p330 = por %p328, %p329
      %p331 = scmp.ne.s32.totalorder %s323, %s325
      %p332 = scmp.eq.s32.totalorder %s37, 1
      %p333 = por %p331, %p332
      %p334 = scmp.ne.s32.totalorder %s325, %s326
      %p335 = scmp.eq.s32.totalorder %s37, 0
      %p336 = por %p334, %p335
      %p337 = scmp.ne.s32.totalorder %s325, %s326
      %p338 = scmp.eq.s32.totalorder %s38, 1
      %p339 = por %p337, %p338
      %p341 = scmp.ne.s32.totalorder %s326, %s340
      %p342 = scmp.eq.s32.totalorder %s38, 0
      %p343 = por %p341, %p342
      %s345 = sadd.s32 %s344, 1
      %p348 = scmp.eq.s32.totalorder %s32, 1
      %p349 = scmp.ne.s32.totalorder %s344, %s346
      %p350 = scmp.eq.s32.totalorder %s32, 0
      %p351 = por %p349, %p350
      %p352 = scmp.ne.s32.totalorder %s344, %s346
      %p353 = scmp.eq.s32.totalorder %s37, 1
      %p354 = por %p352, %p353
      %p355 = scmp.ne.s32.totalorder %s346, %s347
      %p356 = scmp.eq.s32.totalorder %s37, 0
      %p357 = por %p355, %p356
      %p358 = scmp.ne.s32.totalorder %s346, %s347
      %p359 = scmp.eq.s32.totalorder %s38, 1
      %p360 = por %p358, %p359
      %p362 = scmp.ne.s32.totalorder %s347, %s361
      %p363 = scmp.eq.s32.totalorder %s38, 0
      %p364 = por %p362, %p363
      %s366 = sadd.s32 %s365, 1
      %p369 = scmp.eq.s32.totalorder %s32, 1
      %p370 = scmp.ne.s32.totalorder %s365, %s367
      %p371 = scmp.eq.s32.totalorder %s32, 0
      %p372 = por %p370, %p371
      %p373 = scmp.ne.s32.totalorder %s365, %s367
      %p374 = scmp.eq.s32.totalorder %s37, 1
      %p375 = por %p373, %p374
      %p376 = scmp.ne.s32.totalorder %s367, %s368
      %p377 = scmp.eq.s32.totalorder %s37, 0
      %p378 = por %p376, %p377
      %p379 = scmp.ne.s32.totalorder %s367, %s368
      %p380 = scmp.eq.s32.totalorder %s38, 1
      %p381 = por %p379, %p380
      %p383 = scmp.ne.s32.totalorder %s368, %s382
      %p384 = scmp.eq.s32.totalorder %s38, 0
      %p385 = por %p383, %p384
      %s387 = sadd.s32 %s386, 1
      %p390 = scmp.eq.s32.totalorder %s32, 1
      %p391 = scmp.ne.s32.totalorder %s386, %s388
      %p392 = scmp.eq.s32.totalorder %s32, 0
      %p393 = por %p391, %p392
      %p394 = scmp.ne.s32.totalorder %s386, %s388
      %p395 = scmp.eq.s32.totalorder %s37, 1
      %p396 = por %p394, %p395
      %p397 = scmp.ne.s32.totalorder %s388, %s389
      %p398 = scmp.eq.s32.totalorder %s37, 0
      %p399 = por %p397, %p398
      %p400 = scmp.ne.s32.totalorder %s388, %s389
      %p401 = scmp.eq.s32.totalorder %s38, 1
      %p402 = por %p400, %p401
      %p404 = scmp.ne.s32.totalorder %s389, %s403
      %p405 = scmp.eq.s32.totalorder %s38, 0
      %p406 = por %p404, %p405
      %s407 = ssub.s32 %s32, %s39
      %p408 = scmp.eq.s32.totalorder %s407, 0
      %s410 = sadd.s32 %s409, 1
      %s411 = scalar_select %p408, %s409, %s410
      %p414 = pneg %p408
      %p415 = scmp.eq.s32.totalorder %s32, 1
      %p416 = por %p414, %p415
      %p417 = scmp.ne.s32.totalorder %s409, %s412
      %p418 = scmp.eq.s32.totalorder %s32, 0
      %p419 = por %p417, %p418
      %p420 = scmp.ne.s32.totalorder %s409, %s412
      %p421 = scmp.eq.s32.totalorder %s37, 1
      %p422 = por %p420, %p421
      %p423 = scmp.ne.s32.totalorder %s412, %s413
      %p424 = scmp.eq.s32.totalorder %s37, 0
      %p425 = por %p423, %p424
      %p426 = scmp.ne.s32.totalorder %s412, %s413
      %p427 = scmp.eq.s32.totalorder %s38, 1
      %p428 = por %p426, %p427
      %p430 = scmp.ne.s32.totalorder %s413, %s429
      %p431 = scmp.eq.s32.totalorder %s38, 0
      %p432 = por %p430, %p431
      %s433 = ssub.s32 %s32, %s39
      %p434 = scmp.eq.s32.totalorder %s433, 0
      %s436 = sadd.s32 %s435, 1
      %s437 = scalar_select %p434, %s435, %s436
      %p440 = pneg %p434
      %p441 = scmp.eq.s32.totalorder %s32, 1
      %p442 = por %p440, %p441
      %p443 = scmp.ne.s32.totalorder %s435, %s438
      %p444 = scmp.eq.s32.totalorder %s32, 0
      %p445 = por %p443, %p444
      %p446 = scmp.ne.s32.totalorder %s435, %s438
      %p447 = scmp.eq.s32.totalorder %s37, 1
      %p448 = por %p446, %p447
      %p449 = scmp.ne.s32.totalorder %s438, %s439
      %p450 = scmp.eq.s32.totalorder %s37, 0
      %p451 = por %p449, %p450
      %p452 = scmp.ne.s32.totalorder %s438, %s439
      %p453 = scmp.eq.s32.totalorder %s38, 1
      %p454 = por %p452, %p453
      %p456 = scmp.ne.s32.totalorder %s439, %s455
      %p457 = scmp.eq.s32.totalorder %s38, 0
      %p458 = por %p456, %p457
      %s459 = ssub.s32 %s32, %s39
      %p460 = scmp.eq.s32.totalorder %s459, 0
      %s462 = sadd.s32 %s461, 1
      %s463 = scalar_select %p460, %s461, %s462
      %p466 = pneg %p460
      %p467 = scmp.eq.s32.totalorder %s32, 1
      %p468 = por %p466, %p467
      %p469 = scmp.ne.s32.totalorder %s461, %s464
      %p470 = scmp.eq.s32.totalorder %s32, 0
      %p471 = por %p469, %p470
      %p472 = scmp.ne.s32.totalorder %s461, %s464
      %p473 = scmp.eq.s32.totalorder %s37, 1
      %p474 = por %p472, %p473
      %p475 = scmp.ne.s32.totalorder %s464, %s465
      %p476 = scmp.eq.s32.totalorder %s37, 0
      %p477 = por %p475, %p476
      %p478 = scmp.ne.s32.totalorder %s464, %s465
      %p479 = scmp.eq.s32.totalorder %s38, 1
      %p480 = por %p478, %p479
      %p482 = scmp.ne.s32.totalorder %s465, %s481
      %p483 = scmp.eq.s32.totalorder %s38, 0
      %p484 = por %p482, %p483
      %p485 = scmp.le.s32.totalorder 1, %s32
      %p486 = scmp.lt.s32.totalorder %s32, 3
      %p487 = pnand %p485, %p486
      %p488 = pneg %p487
      // Predicated region
      $region9: #{tpu_custom_call.1} parent=5 // pred_check
        _
      $region10: #{tpu_custom_call.1} parent=5 // pred_check_branch
        %490 = sbr.rel (%p487) target = $region12
      $region11: #{tpu_custom_call.1} parent=5 // pred_region
        %s491 = ssub.s32 %s32, 1
        // Predicated region
        $region13: #{tpu_custom_call.1} parent=11 // pred_check
          %p492 = pneg %p105
        $region14: #{tpu_custom_call.1} parent=11 // pred_check_branch
          %494 = sbr.rel (%p492) target = $region16
        $region15: #{tpu_custom_call.1} parent=11 // pred_region
          _
        $region16: #{tpu_custom_call.1} parent=11 // pred_fallthru
          _
        // Predicated region
        $region17: #{tpu_custom_call.1} parent=11 // pred_check
          %p495 = pneg %p126
        $region18: #{tpu_custom_call.1} parent=11 // pred_check_branch
          %497 = sbr.rel (%p495) target = $region20
        $region19: #{tpu_custom_call.1} parent=11 // pred_region
          _
        $region20: #{tpu_custom_call.1} parent=11 // pred_fallthru
          _
        // Predicated region
        $region21: #{tpu_custom_call.1} parent=11 // pred_check
          %p498 = pneg %p147
        $region22: #{tpu_custom_call.1} parent=11 // pred_check_branch
          %500 = sbr.rel (%p498) target = $region24
        $region23: #{tpu_custom_call.1} parent=11 // pred_region
          _
        $region24: #{tpu_custom_call.1} parent=11 // pred_fallthru
          _
        // Predicated region
        $region25: #{tpu_custom_call.1} parent=11 // pred_check
          %p501 = pneg %p168
        $region26: #{tpu_custom_call.1} parent=11 // pred_check_branch
          %503 = sbr.rel (%p501) target = $region28
        $region27: #{tpu_custom_call.1} parent=11 // pred_region
          _
        $region28: #{tpu_custom_call.1} parent=11 // pred_fallthru
          _
        // Predicated region
        $region29: #{tpu_custom_call.1} parent=11 // pred_check
          %p504 = pneg %p189
        $region30: #{tpu_custom_call.1} parent=11 // pred_check_branch
          %506 = sbr.rel (%p504) target = $region32
        $region31: #{tpu_custom_call.1} parent=11 // pred_region
          _
        $region32: #{tpu_custom_call.1} parent=11 // pred_fallthru
          _
        // Predicated region
        $region33: #{tpu_custom_call.1} parent=11 // pred_check
          %p507 = pneg %p210
        $region34: #{tpu_custom_call.1} parent=11 // pred_check_branch
          %509 = sbr.rel (%p507) target = $region36
        $region35: #{tpu_custom_call.1} parent=11 // pred_region
          _
        $region36: #{tpu_custom_call.1} parent=11 // pred_fallthru
          _
        // Predicated region
        $region37: #{tpu_custom_call.1} parent=11 // pred_check
          %p510 = pneg %p231
        $region38: #{tpu_custom_call.1} parent=11 // pred_check_branch
          %512 = sbr.rel (%p510) target = $region40
        $region39: #{tpu_custom_call.1} parent=11 // pred_region
          _
        $region40: #{tpu_custom_call.1} parent=11 // pred_fallthru
          _
        // Predicated region
        $region41: #{tpu_custom_call.1} parent=11 // pred_check
          %p513 = pneg %p252
        $region42: #{tpu_custom_call.1} parent=11 // pred_check_branch
          %515 = sbr.rel (%p513) target = $region44
        $region43: #{tpu_custom_call.1} parent=11 // pred_region
          _
        $region44: #{tpu_custom_call.1} parent=11 // pred_fallthru
          _
        // Predicated region
        $region45: #{tpu_custom_call.1} parent=11 // pred_check
          %p516 = pneg %p273
        $region46: #{tpu_custom_call.1} parent=11 // pred_check_branch
          %518 = sbr.rel (%p516) target = $region48
        $region47: #{tpu_custom_call.1} parent=11 // pred_region
          _
        $region48: #{tpu_custom_call.1} parent=11 // pred_fallthru
          _
        // Predicated region
        $region49: #{tpu_custom_call.1} parent=11 // pred_check
          %p519 = pneg %p294
        $region50: #{tpu_custom_call.1} parent=11 // pred_check_branch
          %521 = sbr.rel (%p519) target = $region52
        $region51: #{tpu_custom_call.1} parent=11 // pred_region
          _
        $region52: #{tpu_custom_call.1} parent=11 // pred_fallthru
          _
        // Predicated region
        $region53: #{tpu_custom_call.1} parent=11 // pred_check
          %p522 = pneg %p315
        $region54: #{tpu_custom_call.1} parent=11 // pred_check_branch
          %524 = sbr.rel (%p522) target = $region56
        $region55: #{tpu_custom_call.1} parent=11 // pred_region
          _
        $region56: #{tpu_custom_call.1} parent=11 // pred_fallthru
          _
        // Predicated region
        $region57: #{tpu_custom_call.1} parent=11 // pred_check
          %p525 = pneg %p336
        $region58: #{tpu_custom_call.1} parent=11 // pred_check_branch
          %527 = sbr.rel (%p525) target = $region60
        $region59: #{tpu_custom_call.1} parent=11 // pred_region
          _
        $region60: #{tpu_custom_call.1} parent=11 // pred_fallthru
          _
        // Predicated region
        $region61: #{tpu_custom_call.1} parent=11 // pred_check
          %p528 = pneg %p357
        $region62: #{tpu_custom_call.1} parent=11 // pred_check_branch
          %530 = sbr.rel (%p528) target = $region64
        $region63: #{tpu_custom_call.1} parent=11 // pred_region
          _
        $region64: #{tpu_custom_call.1} parent=11 // pred_fallthru
          _
        // Predicated region
        $region65: #{tpu_custom_call.1} parent=11 // pred_check
          %p531 = pneg %p378
        $region66: #{tpu_custom_call.1} parent=11 // pred_check_branch
          %533 = sbr.rel (%p531) target = $region68
        $region67: #{tpu_custom_call.1} parent=11 // pred_region
          _
        $region68: #{tpu_custom_call.1} parent=11 // pred_fallthru
          _
        // Predicated region
        $region69: #{tpu_custom_call.1} parent=11 // pred_check
          %p534 = pneg %p399
        $region70: #{tpu_custom_call.1} parent=11 // pred_check_branch
          %536 = sbr.rel (%p534) target = $region72
        $region71: #{tpu_custom_call.1} parent=11 // pred_region
          _
        $region72: #{tpu_custom_call.1} parent=11 // pred_fallthru
          _
      $region12: #{tpu_custom_call.1} parent=5 // pred_fallthru
        _
      %p537 = scmp.lt.s32.totalorder %s32, 2
      // Predicated region
      $region73: #{tpu_custom_call.1} parent=5 // pred_check
        %p538 = pneg %p537
      $region74: #{tpu_custom_call.1} parent=5 // pred_check_branch
        %540 = sbr.rel (%p538) target = $region76
      $region75: #{tpu_custom_call.1} parent=5 // pred_region
        // Predicated region
        $region77: #{tpu_custom_call.1} parent=75 // pred_check
          %p541 = pneg %p52
        $region78: #{tpu_custom_call.1} parent=75 // pred_check_branch
          %543 = sbr.rel (%p541) target = $region80
        $region79: #{tpu_custom_call.1} parent=75 // pred_region
          %s544 = smul.u32 2, %s32
          %p545 = scmp.lt.s32.totalorder %s544, 3
          %s546 = scalar_select %p545, %s544, 3
          %s547 = smul.addr %s546, 4
          %s548 = scalar_lea.vmem %s0, %s547
          %s549 = smul.u32 2, %s32
        $region80: #{tpu_custom_call.1} parent=75 // pred_fallthru
          _
        // Predicated region
        $region81: #{tpu_custom_call.1} parent=75 // pred_check
          %p550 = pneg %p78
        $region82: #{tpu_custom_call.1} parent=75 // pred_check_branch
          %552 = sbr.rel (%p550) target = $region84
        $region83: #{tpu_custom_call.1} parent=75 // pred_region
          %s553 = smul.u32 2, %s32
          %p554 = scmp.lt.s32.totalorder %s553, 3
          %s555 = scalar_select %p554, %s553, 3
          %s556 = smul.addr %s555, 4
          %s557 = scalar_lea.vmem %s1, %s556
          %s558 = smul.u32 2, %s32
        $region84: #{tpu_custom_call.1} parent=75 // pred_fallthru
          _
      $region76: #{tpu_custom_call.1} parent=5 // pred_fallthru
        _
      %p559 = scmp.le.s32.totalorder 1, %s32
      %p560 = scmp.lt.s32.totalorder %s32, 3
      %p561 = pnand %p559, %p560
      %p562 = pneg %p561
      // Predicated region
      $region85: #{tpu_custom_call.1} parent=5 // pred_check
        _
      $region86: #{tpu_custom_call.1} parent=5 // pred_check_branch
        %564 = sbr.rel (%p561) target = $region88
      $region87: #{tpu_custom_call.1} parent=5 // pred_region
        %s565 = ssub.s32 %s32, 1
        %s566 = smul.u32 2, %s37
        %p567 = scmp.lt.s32.totalorder %s566, 3
        %s568 = scalar_select %p567, %s566, 3
        %s569 = smul.addr %s568, 4
        %s570 = scalar_lea.vmem %s0, %s569
        %p571 = pneg %p58
        %p572 = pneg %p55
        %s573 = smul.u32 2, %s37
        %p574 = scmp.lt.s32.totalorder %s573, 3
        %s575 = scalar_select %p574, %s573, 3
        %s576 = smul.addr %s575, 4
        %s577 = scalar_lea.vmem %s1, %s576
        %p578 = pneg %p84
        %p579 = pneg %p81
        %p580 = pneg %p105
        %p581 = pneg %p102
        %p582 = pneg %p126
        %p583 = pneg %p123
        %p584 = pneg %p147
        %p585 = pneg %p144
        %p586 = pneg %p168
        %p587 = pneg %p165
        %p588 = pneg %p189
        %p589 = pneg %p186
        %p590 = pneg %p210
        %p591 = pneg %p207
        %p592 = pneg %p231
        %p593 = pneg %p228
        %p594 = pneg %p252
        %p595 = pneg %p249
        %p596 = pneg %p273
        %p597 = pneg %p270
        %p598 = pneg %p294
        %p599 = pneg %p291
        %p600 = pneg %p315
        %p601 = pneg %p312
        %p602 = pneg %p336
        %p603 = pneg %p333
        %p604 = pneg %p357
        %p605 = pneg %p354
        %p606 = pneg %p378
        %p607 = pneg %p375
        %p608 = pneg %p399
        %p609 = pneg %p396
        %p610 = pneg %p425
        %p611 = pneg %p422
        %s612 = sand.u32 %s412, 1
        %s613 = scalar_lea.sflag [#allocation4], %s612
        %s614 = sand.u32 %s412, 1
        %s615 = smul.addr %s614, 2
        %s616 = scalar_lea.vmem [#allocation3], %s615
        %p617 = pneg %p451
        %p618 = pneg %p448
        %s619 = sand.u32 %s37, 1
        %s620 = scalar_lea.sflag [#allocation6], %s619
        %s621 = sand.u32 %s438, 1
        %s622 = smul.addr %s621, 8
        %s623 = scalar_lea.vmem [#allocation5], %s622
        %p624 = pneg %p477
        %p625 = pneg %p474
        %s626 = sand.u32 %s37, 1
        %s627 = scalar_lea.sflag [#allocation6], %s626
        %s628 = sand.u32 %s464, 1
        %s629 = smul.addr %s628, 8
        %s630 = scalar_lea.vmem [#allocation7], %s629
        %s631 = smul.u32 2, %s37
        %p632 = scmp.lt.s32.totalorder %s631, 3
        %s633 = scalar_select %p632, %s631, 3
        %s634 = smul.addr %s633, 4
        %s635 = scalar_lea.vmem %s0, %s634
        %s636 = smul.u32 2, %s37
        %s637 = smul.u32 2, %s37
        %p638 = scmp.lt.s32.totalorder %s637, 3
        %s639 = scalar_select %p638, %s637, 3
        %s640 = smul.addr %s639, 4
        %s641 = scalar_lea.vmem %s1, %s640
        %s642 = smul.u32 2, %s37
        %s643 = smul.u32 2, %s37
        %s644 = smul.u32 2, %s37
        %s645 = smul.u32 2, %s37
        %v647 = vld [vmem:[%s2] sm:$0xf]
        %v648 = vld [vmem:[%s2 + $0x4] sm:$0xf]
        %v649 = vld [vmem:[%s2 + $0x8] sm:$0xf]
        %v650 = vld [vmem:[%s2 + $0xc] sm:$0xf]
        %v651 = vld [vmem:[%s3] sm:$0xf]
        %v652 = vld [vmem:[%s3 + $0x4] sm:$0xf]
        %v653 = vld [vmem:[%s3 + $0x8] sm:$0xf]
        %v654 = vld [vmem:[%s3 + $0xc] sm:$0xf]
        %v655 = vld [vmem:[%s4] sm:$0xf]
        %v656 = vld [vmem:[%s4 + $0x4] sm:$0x1]
        %v657 = vld [vmem:[%s5] sm:$0xff]
        %v658 = vld [vmem:[%s5 + $0x8] sm:$0xff]
        %v659 = vld [vmem:[%s5 + $0x10] sm:$0xff]
        %v660 = vld [vmem:[%s5 + $0x18] sm:$0xff]
        %v661 = vld [vmem:[%s6] sm:$0xff]
        %v662 = vld [vmem:[%s6 + $0x8] sm:$0xff]
        %v663 = vld [vmem:[%s6 + $0x10] sm:$0xff]
        %v664 = vld [vmem:[%s6 + $0x18] sm:$0xff]
        %v665 = vld [vmem:[%s7] sm:$0xff]
        %v666 = vld [vmem:[%s7 + $0x8] sm:$0x1]
        %v667 = vld [vmem:[%s8] sm:$0x3]
        %v668 = vld [vmem:[%s9] sm:$0xf]
        %v669 = vld [vmem:[%s9 + $0x4] sm:$0xf]
        %v670 = vld [vmem:[%s9 + $0x8] sm:$0xf]
        %v671 = vld [vmem:[%s9 + $0xc] sm:$0xf]
        %v672 = vld [vmem:[%s10] sm:$0xf]
        %v673 = vld [vmem:[%s10 + $0x4] sm:$0xf]
        %v674 = vld [vmem:[%s10 + $0x8] sm:$0xf]
        %v675 = vld [vmem:[%s10 + $0xc] sm:$0xf]
        %v676 = vld [vmem:[%s11] sm:$0xf]
        %v677 = vld [vmem:[%s11 + $0x4] sm:$0xf]
        %v678 = vld [vmem:[%s11 + $0x8] sm:$0xf]
        %v679 = vld [vmem:[%s11 + $0xc] sm:$0xf]
        %v680 = vld [vmem:[%s12] sm:$0xff]
        %v681 = vld [vmem:[%s12 + $0x8] sm:$0xff]
        %v682 = vld [vmem:[%s12 + $0x10] sm:$0xff]
        %v683 = vld [vmem:[%s12 + $0x18] sm:$0xff]
        %v684 = vld [vmem:[%s13] sm:$0xf]
        %v685 = vld [vmem:[%s13 + $0x4] sm:$0xf]
        %v686 = vld [vmem:[%s13 + $0x8] sm:$0xf]
        %v687 = vld [vmem:[%s13 + $0xc] sm:$0xf]
        %v688 = vld [vmem:[%s14] sm:$0xff]
        %v689 = vld [vmem:[%s14 + $0x8] sm:$0xff]
        %v690 = vld [vmem:[%s14 + $0x10] sm:$0xff]
        %v691 = vld [vmem:[%s14 + $0x18] sm:$0xff]
        %v692 = vld [vmem:[%s15] sm:$0x3]
        %v693 = vld [vmem:[%s16] sm:$0x7]
        %v694 = vld [vmem:[%s635] sm:$0x77]
        %v695 = vld [vmem:[%s641] sm:$0x77]
        %v697 = vcombine.high %v694, %v694
        %v699 = vpack.c.bf16 %v694, %v694
        %v700 = vpack.c.bf16 %v697, %v697
        %702 = vset.pattern.permute.xlu0 0
        %703 = vperm.xlu0 %702, %v657
        %v704 = vpop.permute.xlu0 %703
        %707 = vset.pattern.permute.xlu0 0
        %708 = vperm.xlu0 %707, %v658
        %v709 = vpop.permute.xlu0 %708
        %712 = vset.pattern.permute.xlu0 0
        %713 = vperm.xlu0 %712, %v659
        %v714 = vpop.permute.xlu0 %713
        %717 = vset.pattern.permute.xlu0 0
        %718 = vperm.xlu0 %717, %v660
        %v719 = vpop.permute.xlu0 %718
        %v725 = vunpack.c.l.b16 %v647
        %v726 = vunpack.c.l.b16 %v648
        %v727 = vunpack.c.l.b16 %v649
        %v728 = vunpack.c.l.b16 %v650
        %v729 = vpack.c.b16 %v726, %v725
        %v730 = vpack.c.b16 %v728, %v727
        %vm731 = vcmask 23552
        %v733 = vsel %vm731, %v729, 0
        %v736 = vsel %vm731, %v730, 0
        %vm738 = vcmask 1040384
        %vm739 = vcmask 1041408
        %v740 = vsel %vm738, 4294967295, 65535
        %v741 = vsel %vm739, %v740, 0
        %v743 = vand.u32 %v699, %v741
        %v746 = vand.u32 %v700, %v741
        %748 = vmatprep.subr.bf16.mxu0 %v746
        %749 = vmatpush1.bf16.msra.mxu0 %v743
        %750 = vmatprep.subr.bf16.mxu0 0
        %751 = vmatpush1.bf16.msra.mxu0 0
        %752 = vmatprep.subr.bf16.mxu0 0
        %753 = vmatpush1.bf16.msra.mxu0 0
        %754 = vmatprep.subr.bf16.mxu0 0
        %755 = vmatpush1.bf16.msra.mxu0 0
        %756 = vmatprep.subr.bf16.mxu0 0
        %757 = vmatpush1.bf16.msra.mxu0 0
        %758 = vmatprep.subr.bf16.mxu0 0
        %759 = vmatpush1.bf16.msra.mxu0 0
        %760 = vmatprep.subr.bf16.mxu0 0
        %761 = vmatpush1.bf16.msra.mxu0 0
        %762 = vmatprep.subr.bf16.mxu0 0
        %763 = vmatpush1.bf16.msra.mxu0 0
        %764 = vmatprep.subr.bf16.mxu0 0
        %765 = vmatpush1.bf16.msra.mxu0 0
        %766 = vmatprep.subr.bf16.mxu0 0
        %767 = vmatpush1.bf16.msra.mxu0 0
        %768 = vmatprep.subr.bf16.mxu0 0
        %769 = vmatpush1.bf16.msra.mxu0 0
        %770 = vmatprep.subr.bf16.mxu0 0
        %771 = vmatpush1.bf16.msra.mxu0 0
        %772 = vmatprep.subr.bf16.mxu0 0
        %773 = vmatpush1.bf16.msra.mxu0 0
        %774 = vmatprep.subr.bf16.mxu0 0
        %775 = vmatpush1.bf16.msra.mxu0 0
        %776 = vmatprep.subr.bf16.mxu0 0
        %777 = vmatpush1.bf16.msra.mxu0 0
        %778 = vmatprep.subr.bf16.mxu0 0
        %779 = vmatpush1.bf16.msra.mxu0 0
        %780 = vmatprep.mubr.bf16.mxu0 0
        %781 = vmatmul.mubr.bf16.gmra.mrb[0].mxu0 %v733
        %v782 = vpop.f32.mrb[0].mxu0
        %v783 = vadd.f32 %v704, %v782
        %v784 = vpop.f32.mrb[0].mxu0
        %v785 = vadd.f32 %v704, %v784
        %v786 = vpop.f32.mrb[0].mxu0
        %v787 = vadd.f32 %v709, %v786
        %v788 = vpop.f32.mrb[0].mxu0
        %v789 = vadd.f32 %v709, %v788
        %790 = vmatprep.mubr.bf16.mxu0 0
        %791 = vmatmul.mubr.bf16.gmra.mrb[0].mxu0 %v736
        %v792 = vpop.f32.mrb[0].mxu0
        %v793 = vadd.f32 %v714, %v792
        %v794 = vpop.f32.mrb[0].mxu0
        %v795 = vadd.f32 %v714, %v794
        %v796 = vpop.f32.mrb[0].mxu0
        %v797 = vadd.f32 %v719, %v796
        %v798 = vpop.f32.mrb[0].mxu0
        %v799 = vadd.f32 %v719, %v798
        %800 = vdwg.mxu0
        %v801 = vmul.f32 %v783, 100.0
        %v802 = vmul.f32 %v785, 100.0
        %v803 = vmul.f32 %v787, 100.0
        %v804 = vmul.f32 %v789, 100.0
        %v805 = vmul.f32 %v793, 100.0
        %v806 = vmul.f32 %v795, 100.0
        %v807 = vmul.f32 %v797, 100.0
        %v808 = vmul.f32 %v799, 100.0
        %vm809 = vcmp.gt.f32.partialorder %v801, 20.0
        %vm810 = vcmp.gt.f32.partialorder %v802, 20.0
        %vm811 = vcmp.gt.f32.partialorder %v803, 20.0
        %vm812 = vcmp.gt.f32.partialorder %v804, 20.0
        %vm813 = vcmp.gt.f32.partialorder %v805, 20.0
        %vm814 = vcmp.gt.f32.partialorder %v806, 20.0
        %vm815 = vcmp.gt.f32.partialorder %v807, 20.0
        %vm816 = vcmp.gt.f32.partialorder %v808, 20.0
        %v817 = vmin.f32 %v801, 20.0
        %v818 = vmin.f32 %v802, 20.0
        %v819 = vmin.f32 %v803, 20.0
        %v820 = vmin.f32 %v804, 20.0
        %v821 = vmin.f32 %v805, 20.0
        %v822 = vmin.f32 %v806, 20.0
        %v823 = vmin.f32 %v807, 20.0
        %v824 = vmin.f32 %v808, 20.0
        %v825 = vmul.f32 %v817, 1.442695
        %v826 = vpow.pop %v825
        %v827 = vmul.f32 %v818, 1.442695
        %v828 = vpow.pop %v827
        %v829 = vmul.f32 %v819, 1.442695
        %v830 = vpow.pop %v829
        %v831 = vmul.f32 %v820, 1.442695
        %v832 = vpow.pop %v831
        %v833 = vmul.f32 %v821, 1.442695
        %v834 = vpow.pop %v833
        %v835 = vmul.f32 %v822, 1.442695
        %v836 = vpow.pop %v835
        %v837 = vmul.f32 %v823, 1.442695
        %v838 = vpow.pop %v837
        %v839 = vmul.f32 %v824, 1.442695
        %v840 = vpow.pop %v839
        %v841 = vadd.f32 %v826, 1.0
        %v842 = vlog2.pop %v841
        %v843 = vmul.f32 %v842, 0.6931472
        %v844 = vmul.f32 -0.5, %v826
        %v845 = vadd.f32 %v844, 1.0
        %v846 = vmul.f32 %v845, %v826
        %v847 = vand.u32 2147483647, %v826
        %vm848 = vcmp.lt.f32.partialorder %v847, 0.0004427343
        %v849 = vsel %vm848, %v846, %v843
        %v850 = vadd.f32 %v828, 1.0
        %v851 = vlog2.pop %v850
        %v852 = vmul.f32 %v851, 0.6931472
        %v853 = vmul.f32 -0.5, %v828
        %v854 = vadd.f32 %v853, 1.0
        %v855 = vmul.f32 %v854, %v828
        %v856 = vand.u32 2147483647, %v828
        %vm857 = vcmp.lt.f32.partialorder %v856, 0.0004427343
        %v858 = vsel %vm857, %v855, %v852
        %v859 = vadd.f32 %v830, 1.0
        %v860 = vlog2.pop %v859
        %v861 = vmul.f32 %v860, 0.6931472
        %v862 = vmul.f32 -0.5, %v830
        %v863 = vadd.f32 %v862, 1.0
        %v864 = vmul.f32 %v863, %v830
        %v865 = vand.u32 2147483647, %v830
        %vm866 = vcmp.lt.f32.partialorder %v865, 0.0004427343
        %v867 = vsel %vm866, %v864, %v861
        %v868 = vadd.f32 %v832, 1.0
        %v869 = vlog2.pop %v868
        %v870 = vmul.f32 %v869, 0.6931472
        %v871 = vmul.f32 -0.5, %v832
        %v872 = vadd.f32 %v871, 1.0
        %v873 = vmul.f32 %v872, %v832
        %v874 = vand.u32 2147483647, %v832
        %vm875 = vcmp.lt.f32.partialorder %v874, 0.0004427343
        %v876 = vsel %vm875, %v873, %v870
        %v877 = vadd.f32 %v834, 1.0
        %v878 = vlog2.pop %v877
        %v879 = vmul.f32 %v878, 0.6931472
        %v880 = vmul.f32 -0.5, %v834
        %v881 = vadd.f32 %v880, 1.0
        %v882 = vmul.f32 %v881, %v834
        %v883 = vand.u32 2147483647, %v834
        %vm884 = vcmp.lt.f32.partialorder %v883, 0.0004427343
        %v885 = vsel %vm884, %v882, %v879
        %v886 = vadd.f32 %v836, 1.0
        %v887 = vlog2.pop %v886
        %v888 = vmul.f32 %v887, 0.6931472
        %v889 = vmul.f32 -0.5, %v836
        %v890 = vadd.f32 %v889, 1.0
        %v891 = vmul.f32 %v890, %v836
        %v892 = vand.u32 2147483647, %v836
        %vm893 = vcmp.lt.f32.partialorder %v892, 0.0004427343
        %v894 = vsel %vm893, %v891, %v888
        %v895 = vadd.f32 %v838, 1.0
        %v896 = vlog2.pop %v895
        %v897 = vmul.f32 %v896, 0.6931472
        %v898 = vmul.f32 -0.5, %v838
        %v899 = vadd.f32 %v898, 1.0
        %v900 = vmul.f32 %v899, %v838
        %v901 = vand.u32 2147483647, %v838
        %vm902 = vcmp.lt.f32.partialorder %v901, 0.0004427343
        %v903 = vsel %vm902, %v900, %v897
        %v904 = vadd.f32 %v840, 1.0
        %v905 = vlog2.pop %v904
        %v906 = vmul.f32 %v905, 0.6931472
        %v907 = vmul.f32 -0.5, %v840
        %v908 = vadd.f32 %v907, 1.0
        %v909 = vmul.f32 %v908, %v840
        %v910 = vand.u32 2147483647, %v840
        %vm911 = vcmp.lt.f32.partialorder %v910, 0.0004427343
        %v912 = vsel %vm911, %v909, %v906
        %v913 = vmul.f32 %v849, 0.01
        %v914 = vmul.f32 %v858, 0.01
        %v915 = vmul.f32 %v867, 0.01
        %v916 = vmul.f32 %v876, 0.01
        %v917 = vmul.f32 %v885, 0.01
        %v918 = vmul.f32 %v894, 0.01
        %v919 = vmul.f32 %v903, 0.01
        %v920 = vmul.f32 %v912, 0.01
        %v921 = vsel %vm809, %v783, %v913
        %v922 = vsel %vm810, %v785, %v914
        %v923 = vsel %vm811, %v787, %v915
        %v924 = vsel %vm812, %v789, %v916
        %v925 = vsel %vm813, %v793, %v917
        %v926 = vsel %vm814, %v795, %v918
        %v927 = vsel %vm815, %v797, %v919
        %v928 = vsel %vm816, %v799, %v920
        %v929 = vadd.f32 %v826, 1.0
        %v930 = vadd.f32 %v828, 1.0
        %v931 = vadd.f32 %v830, 1.0
        %v932 = vadd.f32 %v832, 1.0
        %v933 = vadd.f32 %v834, 1.0
        %v934 = vadd.f32 %v836, 1.0
        %v935 = vadd.f32 %v838, 1.0
        %v936 = vadd.f32 %v840, 1.0
        %v937 = vrcp.pop %v929
        %v938 = vrcp.pop %v930
        %v939 = vrcp.pop %v931
        %v940 = vrcp.pop %v932
        %v941 = vrcp.pop %v933
        %v942 = vrcp.pop %v934
        %v943 = vrcp.pop %v935
        %v944 = vrcp.pop %v936
        %v945 = vmul.f32 %v826, %v937
        %v946 = vmul.f32 %v828, %v938
        %v947 = vmul.f32 %v830, %v939
        %v948 = vmul.f32 %v832, %v940
        %v949 = vmul.f32 %v834, %v941
        %v950 = vmul.f32 %v836, %v942
        %v951 = vmul.f32 %v838, %v943
        %v952 = vmul.f32 %v840, %v944
        %v953 = vsel %vm809, 1.0, %v945
        %v954 = vsel %vm810, 1.0, %v946
        %v955 = vsel %vm811, 1.0, %v947
        %v956 = vsel %vm812, 1.0, %v948
        %v957 = vsel %vm813, 1.0, %v949
        %v958 = vsel %vm814, 1.0, %v950
        %v959 = vsel %vm815, 1.0, %v951
        %v960 = vsel %vm816, 1.0, %v952
        %v961 = vpack.c.bf16 %v923, %v921
        %v962 = vpack.c.bf16 %v924, %v922
        %v963 = vpack.c.bf16 %v927, %v925
        %v964 = vpack.c.bf16 %v928, %v926
        %966 = vset.pattern.permute.xlu0 0
        %967 = vperm.xlu0 %966, %v661
        %v968 = vpop.permute.xlu0 %967
        %971 = vset.pattern.permute.xlu0 0
        %972 = vperm.xlu0 %971, %v662
        %v973 = vpop.permute.xlu0 %972
        %976 = vset.pattern.permute.xlu0 0
        %977 = vperm.xlu0 %976, %v663
        %v978 = vpop.permute.xlu0 %977
        %981 = vset.pattern.permute.xlu0 0
        %982 = vperm.xlu0 %981, %v664
        %v983 = vpop.permute.xlu0 %982
        %v989 = vunpack.c.l.b16 %v651
        %v990 = vunpack.c.l.b16 %v652
        %v991 = vunpack.c.l.b16 %v653
        %v992 = vunpack.c.l.b16 %v654
        %v993 = vpack.c.b16 %v990, %v989
        %v994 = vpack.c.b16 %v992, %v991
        %vm995 = vcmask 261120
        %v997 = vsel %vm995, %v993, 0
        %v1000 = vsel %vm995, %v994, 0
        %1002 = vmatprep.subr.bf16.mxu0 %v962
        %1003 = vmatpush1.bf16.msra.mxu0 %v961
        %1004 = vmatprep.subr.bf16.mxu0 %v964
        %1005 = vmatpush1.bf16.msra.mxu0 %v963
        %1006 = vmatprep.subr.bf16.mxu0 0
        %1007 = vmatpush1.bf16.msra.mxu0 0
        %1008 = vmatprep.subr.bf16.mxu0 0
        %1009 = vmatpush1.bf16.msra.mxu0 0
        %1010 = vmatprep.subr.bf16.mxu0 0
        %1011 = vmatpush1.bf16.msra.mxu0 0
        %1012 = vmatprep.subr.bf16.mxu0 0
        %1013 = vmatpush1.bf16.msra.mxu0 0
        %1014 = vmatprep.subr.bf16.mxu0 0
        %1015 = vmatpush1.bf16.msra.mxu0 0
        %1016 = vmatprep.subr.bf16.mxu0 0
        %1017 = vmatpush1.bf16.msra.mxu0 0
        %1018 = vmatprep.subr.bf16.mxu0 0
        %1019 = vmatpush1.bf16.msra.mxu0 0
        %1020 = vmatprep.subr.bf16.mxu0 0
        %1021 = vmatpush1.bf16.msra.mxu0 0
        %1022 = vmatprep.subr.bf16.mxu0 0
        %1023 = vmatpush1.bf16.msra.mxu0 0
        %1024 = vmatprep.subr.bf16.mxu0 0
        %1025 = vmatpush1.bf16.msra.mxu0 0
        %1026 = vmatprep.subr.bf16.mxu0 0
        %1027 = vmatpush1.bf16.msra.mxu0 0
        %1028 = vmatprep.subr.bf16.mxu0 0
        %1029 = vmatpush1.bf16.msra.mxu0 0
        %1030 = vmatprep.subr.bf16.mxu0 0
        %1031 = vmatpush1.bf16.msra.mxu0 0
        %1032 = vmatprep.subr.bf16.mxu0 0
        %1033 = vmatpush1.bf16.msra.mxu0 0
        %1034 = vmatprep.mubr.bf16.mxu0 0
        %1035 = vmatmul.mubr.bf16.gmra.mrb[0].mxu0 %v997
        %v1036 = vpop.f32.mrb[0].mxu0
        %v1037 = vadd.f32 %v968, %v1036
        %v1038 = vpop.f32.mrb[0].mxu0
        %v1039 = vadd.f32 %v968, %v1038
        %v1040 = vpop.f32.mrb[0].mxu0
        %v1041 = vadd.f32 %v973, %v1040
        %v1042 = vpop.f32.mrb[0].mxu0
        %v1043 = vadd.f32 %v973, %v1042
        %1044 = vmatprep.mubr.bf16.mxu0 0
        %1045 = vmatmul.mubr.bf16.gmra.mrb[0].mxu0 %v1000
        %v1046 = vpop.f32.mrb[0].mxu0
        %v1047 = vadd.f32 %v978, %v1046
        %v1048 = vpop.f32.mrb[0].mxu0
        %v1049 = vadd.f32 %v978, %v1048
        %v1050 = vpop.f32.mrb[0].mxu0
        %v1051 = vadd.f32 %v983, %v1050
        %v1052 = vpop.f32.mrb[0].mxu0
        %v1053 = vadd.f32 %v983, %v1052
        %1054 = vdwg.mxu0
        %v1055 = vmul.f32 %v1037, 100.0
        %v1056 = vmul.f32 %v1039, 100.0
        %v1057 = vmul.f32 %v1041, 100.0
        %v1058 = vmul.f32 %v1043, 100.0
        %v1059 = vmul.f32 %v1047, 100.0
        %v1060 = vmul.f32 %v1049, 100.0
        %v1061 = vmul.f32 %v1051, 100.0
        %v1062 = vmul.f32 %v1053, 100.0
        %vm1063 = vcmp.gt.f32.partialorder %v1055, 20.0
        %vm1064 = vcmp.gt.f32.partialorder %v1056, 20.0
        %vm1065 = vcmp.gt.f32.partialorder %v1057, 20.0
        %vm1066 = vcmp.gt.f32.partialorder %v1058, 20.0
        %vm1067 = vcmp.gt.f32.partialorder %v1059, 20.0
        %vm1068 = vcmp.gt.f32.partialorder %v1060, 20.0
        %vm1069 = vcmp.gt.f32.partialorder %v1061, 20.0
        %vm1070 = vcmp.gt.f32.partialorder %v1062, 20.0
        %v1071 = vmin.f32 %v1055, 20.0
        %v1072 = vmin.f32 %v1056, 20.0
        %v1073 = vmin.f32 %v1057, 20.0
        %v1074 = vmin.f32 %v1058, 20.0
        %v1075 = vmin.f32 %v1059, 20.0
        %v1076 = vmin.f32 %v1060, 20.0
        %v1077 = vmin.f32 %v1061, 20.0
        %v1078 = vmin.f32 %v1062, 20.0
        %v1079 = vmul.f32 %v1071, 1.442695
        %v1080 = vpow.pop %v1079
        %v1081 = vmul.f32 %v1072, 1.442695
        %v1082 = vpow.pop %v1081
        %v1083 = vmul.f32 %v1073, 1.442695
        %v1084 = vpow.pop %v1083
        %v1085 = vmul.f32 %v1074, 1.442695
        %v1086 = vpow.pop %v1085
        %v1087 = vmul.f32 %v1075, 1.442695
        %v1088 = vpow.pop %v1087
        %v1089 = vmul.f32 %v1076, 1.442695
        %v1090 = vpow.pop %v1089
        %v1091 = vmul.f32 %v1077, 1.442695
        %v1092 = vpow.pop %v1091
        %v1093 = vmul.f32 %v1078, 1.442695
        %v1094 = vpow.pop %v1093
        %v1095 = vadd.f32 %v1080, 1.0
        %v1096 = vlog2.pop %v1095
        %v1097 = vmul.f32 %v1096, 0.6931472
        %v1098 = vmul.f32 -0.5, %v1080
        %v1099 = vadd.f32 %v1098, 1.0
        %v1100 = vmul.f32 %v1099, %v1080
        %v1101 = vand.u32 2147483647, %v1080
        %vm1102 = vcmp.lt.f32.partialorder %v1101, 0.0004427343
        %v1103 = vsel %vm1102, %v1100, %v1097
        %v1104 = vadd.f32 %v1082, 1.0
        %v1105 = vlog2.pop %v1104
        %v1106 = vmul.f32 %v1105, 0.6931472
        %v1107 = vmul.f32 -0.5, %v1082
        %v1108 = vadd.f32 %v1107, 1.0
        %v1109 = vmul.f32 %v1108, %v1082
        %v1110 = vand.u32 2147483647, %v1082
        %vm1111 = vcmp.lt.f32.partialorder %v1110, 0.0004427343
        %v1112 = vsel %vm1111, %v1109, %v1106
        %v1113 = vadd.f32 %v1084, 1.0
        %v1114 = vlog2.pop %v1113
        %v1115 = vmul.f32 %v1114, 0.6931472
        %v1116 = vmul.f32 -0.5, %v1084
        %v1117 = vadd.f32 %v1116, 1.0
        %v1118 = vmul.f32 %v1117, %v1084
        %v1119 = vand.u32 2147483647, %v1084
        %vm1120 = vcmp.lt.f32.partialorder %v1119, 0.0004427343
        %v1121 = vsel %vm1120, %v1118, %v1115
        %v1122 = vadd.f32 %v1086, 1.0
        %v1123 = vlog2.pop %v1122
        %v1124 = vmul.f32 %v1123, 0.6931472
        %v1125 = vmul.f32 -0.5, %v1086
        %v1126 = vadd.f32 %v1125, 1.0
        %v1127 = vmul.f32 %v1126, %v1086
        %v1128 = vand.u32 2147483647, %v1086
        %vm1129 = vcmp.lt.f32.partialorder %v1128, 0.0004427343
        %v1130 = vsel %vm1129, %v1127, %v1124
        %v1131 = vadd.f32 %v1088, 1.0
        %v1132 = vlog2.pop %v1131
        %v1133 = vmul.f32 %v1132, 0.6931472
        %v1134 = vmul.f32 -0.5, %v1088
        %v1135 = vadd.f32 %v1134, 1.0
        %v1136 = vmul.f32 %v1135, %v1088
        %v1137 = vand.u32 2147483647, %v1088
        %vm1138 = vcmp.lt.f32.partialorder %v1137, 0.0004427343
        %v1139 = vsel %vm1138, %v1136, %v1133
        %v1140 = vadd.f32 %v1090, 1.0
        %v1141 = vlog2.pop %v1140
        %v1142 = vmul.f32 %v1141, 0.6931472
        %v1143 = vmul.f32 -0.5, %v1090
        %v1144 = vadd.f32 %v1143, 1.0
        %v1145 = vmul.f32 %v1144, %v1090
        %v1146 = vand.u32 2147483647, %v1090
        %vm1147 = vcmp.lt.f32.partialorder %v1146, 0.0004427343
        %v1148 = vsel %vm1147, %v1145, %v1142
        %v1149 = vadd.f32 %v1092, 1.0
        %v1150 = vlog2.pop %v1149
        %v1151 = vmul.f32 %v1150, 0.6931472
        %v1152 = vmul.f32 -0.5, %v1092
        %v1153 = vadd.f32 %v1152, 1.0
        %v1154 = vmul.f32 %v1153, %v1092
        %v1155 = vand.u32 2147483647, %v1092
        %vm1156 = vcmp.lt.f32.partialorder %v1155, 0.0004427343
        %v1157 = vsel %vm1156, %v1154, %v1151
        %v1158 = vadd.f32 %v1094, 1.0
        %v1159 = vlog2.pop %v1158
        %v1160 = vmul.f32 %v1159, 0.6931472
        %v1161 = vmul.f32 -0.5, %v1094
        %v1162 = vadd.f32 %v1161, 1.0
        %v1163 = vmul.f32 %v1162, %v1094
        %v1164 = vand.u32 2147483647, %v1094
        %vm1165 = vcmp.lt.f32.partialorder %v1164, 0.0004427343
        %v1166 = vsel %vm1165, %v1163, %v1160
        %v1167 = vmul.f32 %v1103, 0.01
        %v1168 = vmul.f32 %v1112, 0.01
        %v1169 = vmul.f32 %v1121, 0.01
        %v1170 = vmul.f32 %v1130, 0.01
        %v1171 = vmul.f32 %v1139, 0.01
        %v1172 = vmul.f32 %v1148, 0.01
        %v1173 = vmul.f32 %v1157, 0.01
        %v1174 = vmul.f32 %v1166, 0.01
        %v1175 = vsel %vm1063, %v1037, %v1167
        %v1176 = vsel %vm1064, %v1039, %v1168
        %v1177 = vsel %vm1065, %v1041, %v1169
        %v1178 = vsel %vm1066, %v1043, %v1170
        %v1179 = vsel %vm1067, %v1047, %v1171
        %v1180 = vsel %vm1068, %v1049, %v1172
        %v1181 = vsel %vm1069, %v1051, %v1173
        %v1182 = vsel %vm1070, %v1053, %v1174
        %v1183 = vadd.f32 %v1080, 1.0
        %v1184 = vadd.f32 %v1082, 1.0
        %v1185 = vadd.f32 %v1084, 1.0
        %v1186 = vadd.f32 %v1086, 1.0
        %v1187 = vadd.f32 %v1088, 1.0
        %v1188 = vadd.f32 %v1090, 1.0
        %v1189 = vadd.f32 %v1092, 1.0
        %v1190 = vadd.f32 %v1094, 1.0
        %v1191 = vrcp.pop %v1183
        %v1192 = vrcp.pop %v1184
        %v1193 = vrcp.pop %v1185
        %v1194 = vrcp.pop %v1186
        %v1195 = vrcp.pop %v1187
        %v1196 = vrcp.pop %v1188
        %v1197 = vrcp.pop %v1189
        %v1198 = vrcp.pop %v1190
        %v1199 = vmul.f32 %v1080, %v1191
        %v1200 = vmul.f32 %v1082, %v1192
        %v1201 = vmul.f32 %v1084, %v1193
        %v1202 = vmul.f32 %v1086, %v1194
        %v1203 = vmul.f32 %v1088, %v1195
        %v1204 = vmul.f32 %v1090, %v1196
        %v1205 = vmul.f32 %v1092, %v1197
        %v1206 = vmul.f32 %v1094, %v1198
        %v1207 = vsel %vm1063, 1.0, %v1199
        %v1208 = vsel %vm1064, 1.0, %v1200
        %v1209 = vsel %vm1065, 1.0, %v1201
        %v1210 = vsel %vm1066, 1.0, %v1202
        %v1211 = vsel %vm1067, 1.0, %v1203
        %v1212 = vsel %vm1068, 1.0, %v1204
        %v1213 = vsel %vm1069, 1.0, %v1205
        %v1214 = vsel %vm1070, 1.0, %v1206
        %v1215 = vpack.c.bf16 %v1177, %v1175
        %v1216 = vpack.c.bf16 %v1178, %v1176
        %v1217 = vpack.c.bf16 %v1181, %v1179
        %v1218 = vpack.c.bf16 %v1182, %v1180
        %1220 = vset.pattern.permute.xlu0 0
        %1221 = vperm.xlu0 %1220, %v665
        %v1222 = vpop.permute.xlu0 %1221
        %1225 = vset.pattern.permute.xlu0 0
        %1226 = vperm.xlu0 %1225, %v666
        %v1227 = vpop.permute.xlu0 %1226
        %v1231 = vunpack.c.l.b16 %v655
        %v1232 = vunpack.c.l.b16 %v656
        %v1233 = vpack.c.b16 %v1232, %v1231
        %v1235 = vsel %vm995, %v1233, 0
        %1237 = vmatprep.subr.bf16.mxu0 %v1216
        %1238 = vmatpush1.bf16.msra.mxu0 %v1215
        %1239 = vmatprep.subr.bf16.mxu0 %v1218
        %1240 = vmatpush1.bf16.msra.mxu0 %v1217
        %1241 = vmatprep.subr.bf16.mxu0 0
        %1242 = vmatpush1.bf16.msra.mxu0 0
        %1243 = vmatprep.subr.bf16.mxu0 0
        %1244 = vmatpush1.bf16.msra.mxu0 0
        %1245 = vmatprep.subr.bf16.mxu0 0
        %1246 = vmatpush1.bf16.msra.mxu0 0
        %1247 = vmatprep.subr.bf16.mxu0 0
        %1248 = vmatpush1.bf16.msra.mxu0 0
        %1249 = vmatprep.subr.bf16.mxu0 0
        %1250 = vmatpush1.bf16.msra.mxu0 0
        %1251 = vmatprep.subr.bf16.mxu0 0
        %1252 = vmatpush1.bf16.msra.mxu0 0
        %1253 = vmatprep.subr.bf16.mxu0 0
        %1254 = vmatpush1.bf16.msra.mxu0 0
        %1255 = vmatprep.subr.bf16.mxu0 0
        %1256 = vmatpush1.bf16.msra.mxu0 0
        %1257 = vmatprep.subr.bf16.mxu0 0
        %1258 = vmatpush1.bf16.msra.mxu0 0
        %1259 = vmatprep.subr.bf16.mxu0 0
        %1260 = vmatpush1.bf16.msra.mxu0 0
        %1261 = vmatprep.subr.bf16.mxu0 0
        %1262 = vmatpush1.bf16.msra.mxu0 0
        %1263 = vmatprep.subr.bf16.mxu0 0
        %1264 = vmatpush1.bf16.msra.mxu0 0
        %1265 = vmatprep.subr.bf16.mxu0 0
        %1266 = vmatpush1.bf16.msra.mxu0 0
        %1267 = vmatprep.subr.bf16.mxu0 0
        %1268 = vmatpush1.bf16.msra.mxu0 0
        %1269 = vmatprep.mubr.bf16.mxu0 0
        %1270 = vmatmul.mubr.bf16.gmra.mrb[0].mxu0 %v1235
        %v1271 = vpop.f32.mrb[0].mxu0
        %v1272 = vadd.f32 %v1222, %v1271
        %v1273 = vpop.f32.mrb[0].mxu0
        %v1274 = vadd.f32 %v1222, %v1273
        %v1275 = vpop.f32.mrb[0].mxu0
        %v1276 = vadd.f32 %v1227, %v1275
        %v1277 = vpop.f32.mrb[0].mxu0
        %v1278 = vadd.f32 %v1227, %v1277
        %1279 = vdwg.mxu0
        %v1280 = vunpack.c.l.bf16 %v672
        %v1281 = vunpack.c.l.bf16 %v673
        %v1282 = vunpack.c.l.bf16 %v674
        %v1283 = vunpack.c.l.bf16 %v675
        %1285 = vset.pattern.permute.xlu0 0
        %1286 = vperm.xlu0 %1285, %v1280
        %v1287 = vpop.permute.xlu0 %1286
        %1290 = vset.pattern.permute.xlu0 0
        %1291 = vperm.xlu0 %1290, %v1281
        %v1292 = vpop.permute.xlu0 %1291
        %1295 = vset.pattern.permute.xlu0 0
        %1296 = vperm.xlu0 %1295, %v1282
        %v1297 = vpop.permute.xlu0 %1296
        %1300 = vset.pattern.permute.xlu0 0
        %1301 = vperm.xlu0 %1300, %v1283
        %v1302 = vpop.permute.xlu0 %1301
        %v1304 = vmul.f32 %v1287, %v1207
        %v1305 = vmul.f32 %v1287, %v1208
        %v1306 = vmul.f32 %v1292, %v1209
        %v1307 = vmul.f32 %v1292, %v1210
        %v1308 = vmul.f32 %v1297, %v1211
        %v1309 = vmul.f32 %v1297, %v1212
        %v1310 = vmul.f32 %v1302, %v1213
        %v1311 = vmul.f32 %v1302, %v1214
        %v1312 = vpack.c.bf16 %v1306, %v1304
        %v1313 = vpack.c.bf16 %v1307, %v1305
        %v1314 = vpack.c.bf16 %v1310, %v1308
        %v1315 = vpack.c.bf16 %v1311, %v1309
        %v1320 = vunpack.c.l.b16 %v668
        %v1321 = vunpack.c.l.b16 %v669
        %v1322 = vunpack.c.l.b16 %v670
        %v1323 = vunpack.c.l.b16 %v671
        %v1324 = vpack.c.b16 %v1321, %v1320
        %v1325 = vpack.c.b16 %v1323, %v1322
        %v1327 = vsel %vm995, %v1324, 0
        %v1330 = vsel %vm995, %v1325, 0
        %1332 = vmatprep.subr.bf16.mxu0 %v1313
        %1333 = vmatpush1.bf16.msra.mxu0 %v1312
        %1334 = vmatprep.subr.bf16.mxu0 %v1315
        %1335 = vmatpush1.bf16.msra.mxu0 %v1314
        %1336 = vmatprep.subr.bf16.mxu0 0
        %1337 = vmatpush1.bf16.msra.mxu0 0
        %1338 = vmatprep.subr.bf16.mxu0 0
        %1339 = vmatpush1.bf16.msra.mxu0 0
        %1340 = vmatprep.subr.bf16.mxu0 0
        %1341 = vmatpush1.bf16.msra.mxu0 0
        %1342 = vmatprep.subr.bf16.mxu0 0
        %1343 = vmatpush1.bf16.msra.mxu0 0
        %1344 = vmatprep.subr.bf16.mxu0 0
        %1345 = vmatpush1.bf16.msra.mxu0 0
        %1346 = vmatprep.subr.bf16.mxu0 0
        %1347 = vmatpush1.bf16.msra.mxu0 0
        %1348 = vmatprep.subr.bf16.mxu0 0
        %1349 = vmatpush1.bf16.msra.mxu0 0
        %1350 = vmatprep.subr.bf16.mxu0 0
        %1351 = vmatpush1.bf16.msra.mxu0 0
        %1352 = vmatprep.subr.bf16.mxu0 0
        %1353 = vmatpush1.bf16.msra.mxu0 0
        %1354 = vmatprep.subr.bf16.mxu0 0
        %1355 = vmatpush1.bf16.msra.mxu0 0
        %1356 = vmatprep.subr.bf16.mxu0 0
        %1357 = vmatpush1.bf16.msra.mxu0 0
        %1358 = vmatprep.subr.bf16.mxu0 0
        %1359 = vmatpush1.bf16.msra.mxu0 0
        %1360 = vmatprep.subr.bf16.mxu0 0
        %1361 = vmatpush1.bf16.msra.mxu0 0
        %1362 = vmatprep.subr.bf16.mxu0 0
        %1363 = vmatpush1.bf16.msra.mxu0 0
        %1364 = vmatprep.mubr.bf16.mxu0 0
        %1365 = vmatmul.mubr.bf16.gmra.mrb[0].mxu0 %v1327
        %v1366 = vpop.f32.mrb[0].mxu0
        %v1367 = vadd.f32 0.0, %v1366
        %v1368 = vpop.f32.mrb[0].mxu0
        %v1369 = vadd.f32 0.0, %v1368
        %v1370 = vpop.f32.mrb[0].mxu0
        %v1371 = vadd.f32 0.0, %v1370
        %v1372 = vpop.f32.mrb[0].mxu0
        %v1373 = vadd.f32 0.0, %v1372
        %1374 = vmatprep.mubr.bf16.mxu0 0
        %1375 = vmatmul.mubr.bf16.gmra.mrb[0].mxu0 %v1330
        %v1376 = vpop.f32.mrb[0].mxu0
        %v1377 = vadd.f32 0.0, %v1376
        %v1378 = vpop.f32.mrb[0].mxu0
        %v1379 = vadd.f32 0.0, %v1378
        %v1380 = vpop.f32.mrb[0].mxu0
        %v1381 = vadd.f32 0.0, %v1380
        %v1382 = vpop.f32.mrb[0].mxu0
        %v1383 = vadd.f32 0.0, %v1382
        %1384 = vdwg.mxu0
        %v1385 = vmul.f32 %v1367, %v953
        %v1386 = vmul.f32 %v1369, %v954
        %v1387 = vmul.f32 %v1371, %v955
        %v1388 = vmul.f32 %v1373, %v956
        %v1389 = vmul.f32 %v1377, %v957
        %v1390 = vmul.f32 %v1379, %v958
        %v1391 = vmul.f32 %v1381, %v959
        %v1392 = vmul.f32 %v1383, %v960
        %v1393 = vpack.c.bf16 %v1387, %v1385
        %v1394 = vpack.c.bf16 %v1388, %v1386
        %v1395 = vpack.c.bf16 %v1391, %v1389
        %v1396 = vpack.c.bf16 %v1392, %v1390
        %v1398 = vsel %vm995, %v667, 0
        %1400 = vmatprep.subr.bf16.mxu0 %v1394
        %1401 = vmatpush1.bf16.msra.mxu0 %v1393
        %1402 = vmatprep.subr.bf16.mxu0 %v1396
        %1403 = vmatpush1.bf16.msra.mxu0 %v1395
        %1404 = vmatprep.subr.bf16.mxu0 0
        %1405 = vmatpush1.bf16.msra.mxu0 0
        %1406 = vmatprep.subr.bf16.mxu0 0
        %1407 = vmatpush1.bf16.msra.mxu0 0
        %1408 = vmatprep.subr.bf16.mxu0 0
        %1409 = vmatpush1.bf16.msra.mxu0 0
        %1410 = vmatprep.subr.bf16.mxu0 0
        %1411 = vmatpush1.bf16.msra.mxu0 0
        %1412 = vmatprep.subr.bf16.mxu0 0
        %1413 = vmatpush1.bf16.msra.mxu0 0
        %1414 = vmatprep.subr.bf16.mxu0 0
        %1415 = vmatpush1.bf16.msra.mxu0 0
        %1416 = vmatprep.subr.bf16.mxu0 0
        %1417 = vmatpush1.bf16.msra.mxu0 0
        %1418 = vmatprep.subr.bf16.mxu0 0
        %1419 = vmatpush1.bf16.msra.mxu0 0
        %1420 = vmatprep.subr.bf16.mxu0 0
        %1421 = vmatpush1.bf16.msra.mxu0 0
        %1422 = vmatprep.subr.bf16.mxu0 0
        %1423 = vmatpush1.bf16.msra.mxu0 0
        %1424 = vmatprep.subr.bf16.mxu0 0
        %1425 = vmatpush1.bf16.msra.mxu0 0
        %1426 = vmatprep.subr.bf16.mxu0 0
        %1427 = vmatpush1.bf16.msra.mxu0 0
        %1428 = vmatprep.subr.bf16.mxu0 0
        %1429 = vmatpush1.bf16.msra.mxu0 0
        %1430 = vmatprep.subr.bf16.mxu0 0
        %1431 = vmatpush1.bf16.msra.mxu0 0
        %1432 = vmatprep.mubr.bf16.mxu0 0
        %1433 = vmatmul.mubr.bf16.gmra.mrb[0].mxu0 %v1398
        %v1434 = vpop.f32.mrb[0].mxu0
        %v1435 = vadd.f32 0.0, %v1434
        %v1436 = vpop.f32.mrb[0].mxu0
        %v1437 = vadd.f32 0.0, %v1436
        %v1438 = vpop.f32.mrb[0].mxu0
        %v1439 = vpop.f32.mrb[0].mxu0
        %1440 = vdwg.mxu0
        %v1441 = vmul.f32 %v694, %v694
        %v1443 = vcombine.high %v1441, %v1441
        %vm1445 = vcmask 1042432
        %v1446 = vsel %vm1445, %v1441, 0.0
        %v1447 = vrot.slane %v1446, 4
        %v1448 = vadd.f32 %v1446, %v1447
        %v1449 = vrot.slane %v1448, 2
        %v1450 = vadd.f32 %v1448, %v1449
        %v1451 = vrot.slane %v1450, 1
        %v1452 = vadd.f32 %v1450, %v1451
        %v1453 = vsel %vm1445, %v1443, 0.0
        %v1454 = vrot.slane %v1453, 4
        %v1455 = vadd.f32 %v1453, %v1454
        %v1456 = vrot.slane %v1455, 2
        %v1457 = vadd.f32 %v1455, %v1456
        %v1458 = vrot.slane %v1457, 1
        %v1459 = vadd.f32 %v1457, %v1458
        %v1460 = vrsqrt.pop %v1452
        %v1461 = vmul.f32 %v1452, %v1460
        %vm1462 = vcmp.eq.f32.partialorder %v1452, inf
        %v1463 = vsel %vm1462, %v1452, %v1461
        %vm1464 = vcmp.eq.f32.partialorder %v1452, 0.0
        %v1465 = vand.u32 %v1452, 2147483648
        %v1466 = vsel %vm1464, %v1465, %v1463
        %v1467 = vrsqrt.pop %v1459
        %v1468 = vmul.f32 %v1459, %v1467
        %vm1469 = vcmp.eq.f32.partialorder %v1459, inf
        %v1470 = vsel %vm1469, %v1459, %v1468
        %vm1471 = vcmp.eq.f32.partialorder %v1459, 0.0
        %v1472 = vand.u32 %v1459, 2147483648
        %v1473 = vsel %vm1471, %v1472, %v1470
        %v1474 = vsub.f32 1.0, %v1466
        %v1475 = vsub.f32 1.0, %v1473
        %v1476 = vmin.f32 %v1272, %v1474
        %v1477 = vmin.f32 %v1274, %v1475
        %v1478 = vmul.f32 %v694, -1.0
        %v1479 = vmax.f32 %v1466, 1e-12
        %v1480 = vmax.f32 %v1473, 1e-12
        %v1483 = vcombine.low %v1479, %v1480
        %v1485 = vrcp.pop %v1483
        %v1486 = vmul.f32 %v1478, %v1485
        %vm1487 = vcmp.le.f32.partialorder %v1272, %v1474
        %vm1488 = vcmp.le.f32.partialorder %v1274, %v1475
        %v1489 = vsel %vm1487, 1, 0
        %v1490 = vsel %vm1488, 1, 0
        %v1491 = vlaneseq
        %v1492 = vshrl.u32 %v1491, 7
        %v1493 = vsub.s32 0, %v1492
        %v1494 = vrot.slane %v1489, %v1493
        %v1495 = vlaneseq
        %v1496 = vshrl.u32 %v1495, 7
        %v1497 = vsub.s32 0, %v1496
        %v1498 = vrot.slane %v1490, %v1497
        %vm1499 = vcmp.eq.s32.totalorder %v1494, 1
        %vm1500 = vcmp.eq.s32.totalorder %v1498, 1
        %v1502 = vcombine.high %v1486, %v1486
        %v1504 = vsel %vm1499, %v1435, %v1486
        %v1505 = vsel %vm1500, %v1437, %v1502
        %1506 = vst [vmem:[#allocation2] sm:$0x7] %v694
        %1507 = vst [vmem:[#allocation2 + $0x8] sm:$0x7] %v697
        %v1509 = vcombine.high %v695, %v695
        %v1510 = vrot.slane %v695, 5
        %v1511 = vrot.slane %v1509, 5
        %1514 = vst [vmem:[#allocation2] sm:$0x38] %v1510
        %1515 = vst [vmem:[#allocation2 + $0x8] sm:$0x38] %v1511
        %v1518 = vrot.slane %v1504, 2
        %v1519 = vrot.slane %v1505, 2
        %1522 = vst [vmem:[#allocation2] sm:$0xc0] %v1518
        %1523 = vst [vmem:[#allocation2 + $0x8] sm:$0xc0] %v1519
        %1524 = vst [vmem:[#allocation2 + $0x10] sm:$0x1] %v1518
        %1525 = vst [vmem:[#allocation2 + $0x18] sm:$0x1] %v1519
        %1526 = vst [vmem:[#allocation2 + $0x10] sm:$0xfe] %v1272
        %1527 = vst [vmem:[#allocation2 + $0x18] sm:$0xfe] %v1274
        %1528 = vst [vmem:[#allocation2 + $0x20] sm:$0x1] %v1276
        %1529 = vst [vmem:[#allocation2 + $0x28] sm:$0x1] %v1278
        %v1530 = vld [vmem:[#allocation2] sm:$0xff]
        %v1531 = vld [vmem:[#allocation2 + $0x8] sm:$0xff]
        %v1532 = vld [vmem:[#allocation2 + $0x10] sm:$0xff]
        %v1533 = vld [vmem:[#allocation2 + $0x18] sm:$0xff]
        %v1534 = vld [vmem:[#allocation2 + $0x20] sm:$0x1]
        %v1535 = vld [vmem:[#allocation2 + $0x28] sm:$0x1]
        %v1536 = vpack.c.bf16 %v1532, %v1530
        %v1537 = vpack.c.bf16 %v1533, %v1531
        %v1538 = vpack.c.bf16 %v1534, %v1534
        %v1539 = vpack.c.bf16 %v1535, %v1535
        %1541 = vset.pattern.permute.xlu0 0
        %1542 = vperm.xlu0 %1541, %v680
        %v1543 = vpop.permute.xlu0 %1542
        %1546 = vset.pattern.permute.xlu0 0
        %1547 = vperm.xlu0 %1546, %v681
        %v1548 = vpop.permute.xlu0 %1547
        %1551 = vset.pattern.permute.xlu0 0
        %1552 = vperm.xlu0 %1551, %v682
        %v1553 = vpop.permute.xlu0 %1552
        %1556 = vset.pattern.permute.xlu0 0
        %1557 = vperm.xlu0 %1556, %v683
        %v1558 = vpop.permute.xlu0 %1557
        %v1564 = vunpack.c.l.b16 %v676
        %v1565 = vunpack.c.l.b16 %v677
        %v1566 = vunpack.c.l.b16 %v678
        %v1567 = vunpack.c.l.b16 %v679
        %v1568 = vpack.c.b16 %v1565, %v1564
        %v1569 = vpack.c.b16 %v1567, %v1566
        %vm1570 = vcmask 138240
        %v1572 = vsel %vm1570, %v1568, 0
        %v1575 = vsel %vm1570, %v1569, 0
        %v1577 = vsel 0, 4294967295, 65535
        %v1578 = vsel %vm738, %v1577, 0
        %v1580 = vand.u32 %v1538, %v1578
        %v1583 = vand.u32 %v1539, %v1578
        %1585 = vmatprep.subr.bf16.mxu0 %v1537
        %1586 = vmatpush1.bf16.msra.mxu0 %v1536
        %1587 = vmatprep.subr.bf16.mxu0 %v1583
        %1588 = vmatpush1.bf16.msra.mxu0 %v1580
        %1589 = vmatprep.subr.bf16.mxu0 0
        %1590 = vmatpush1.bf16.msra.mxu0 0
        %1591 = vmatprep.subr.bf16.mxu0 0
        %1592 = vmatpush1.bf16.msra.mxu0 0
        %1593 = vmatprep.subr.bf16.mxu0 0
        %1594 = vmatpush1.bf16.msra.mxu0 0
        %1595 = vmatprep.subr.bf16.mxu0 0
        %1596 = vmatpush1.bf16.msra.mxu0 0
        %1597 = vmatprep.subr.bf16.mxu0 0
        %1598 = vmatpush1.bf16.msra.mxu0 0
        %1599 = vmatprep.subr.bf16.mxu0 0
        %1600 = vmatpush1.bf16.msra.mxu0 0
        %1601 = vmatprep.subr.bf16.mxu0 0
        %1602 = vmatpush1.bf16.msra.mxu0 0
        %1603 = vmatprep.subr.bf16.mxu0 0
        %1604 = vmatpush1.bf16.msra.mxu0 0
        %1605 = vmatprep.subr.bf16.mxu0 0
        %1606 = vmatpush1.bf16.msra.mxu0 0
        %1607 = vmatprep.subr.bf16.mxu0 0
        %1608 = vmatpush1.bf16.msra.mxu0 0
        %1609 = vmatprep.subr.bf16.mxu0 0
        %1610 = vmatpush1.bf16.msra.mxu0 0
        %1611 = vmatprep.subr.bf16.mxu0 0
        %1612 = vmatpush1.bf16.msra.mxu0 0
        %1613 = vmatprep.subr.bf16.mxu0 0
        %1614 = vmatpush1.bf16.msra.mxu0 0
        %1615 = vmatprep.subr.bf16.mxu0 0
        %1616 = vmatpush1.bf16.msra.mxu0 0
        %1617 = vmatprep.mubr.bf16.mxu0 0
        %1618 = vmatmul.mubr.bf16.gmra.mrb[0].mxu0 %v1572
        %v1619 = vpop.f32.mrb[0].mxu0
        %v1620 = vadd.f32 %v1543, %v1619
        %v1621 = vpop.f32.mrb[0].mxu0
        %v1622 = vadd.f32 %v1543, %v1621
        %v1623 = vpop.f32.mrb[0].mxu0
        %v1624 = vadd.f32 %v1548, %v1623
        %v1625 = vpop.f32.mrb[0].mxu0
        %v1626 = vadd.f32 %v1548, %v1625
        %1627 = vmatprep.mubr.bf16.mxu0 0
        %1628 = vmatmul.mubr.bf16.gmra.mrb[0].mxu0 %v1575
        %v1629 = vpop.f32.mrb[0].mxu0
        %v1630 = vadd.f32 %v1553, %v1629
        %v1631 = vpop.f32.mrb[0].mxu0
        %v1632 = vadd.f32 %v1553, %v1631
        %v1633 = vpop.f32.mrb[0].mxu0
        %v1634 = vadd.f32 %v1558, %v1633
        %v1635 = vpop.f32.mrb[0].mxu0
        %v1636 = vadd.f32 %v1558, %v1635
        %1637 = vdwg.mxu0
        %v1638 = vmax.f32 %v1620, 0.0
        %v1639 = vmax.f32 %v1622, 0.0
        %v1640 = vmax.f32 %v1624, 0.0
        %v1641 = vmax.f32 %v1626, 0.0
        %v1642 = vmax.f32 %v1630, 0.0
        %v1643 = vmax.f32 %v1632, 0.0
        %v1644 = vmax.f32 %v1634, 0.0
        %v1645 = vmax.f32 %v1636, 0.0
        %v1646 = vpack.c.bf16 %v1640, %v1638
        %v1647 = vpack.c.bf16 %v1641, %v1639
        %v1648 = vpack.c.bf16 %v1644, %v1642
        %v1649 = vpack.c.bf16 %v1645, %v1643
        %1651 = vset.pattern.permute.xlu0 0
        %1652 = vperm.xlu0 %1651, %v688
        %v1653 = vpop.permute.xlu0 %1652
        %1656 = vset.pattern.permute.xlu0 0
        %1657 = vperm.xlu0 %1656, %v689
        %v1658 = vpop.permute.xlu0 %1657
        %1661 = vset.pattern.permute.xlu0 0
        %1662 = vperm.xlu0 %1661, %v690
        %v1663 = vpop.permute.xlu0 %1662
        %1666 = vset.pattern.permute.xlu0 0
        %1667 = vperm.xlu0 %1666, %v691
        %v1668 = vpop.permute.xlu0 %1667
        %v1674 = vunpack.c.l.b16 %v684
        %v1675 = vunpack.c.l.b16 %v685
        %v1676 = vunpack.c.l.b16 %v686
        %v1677 = vunpack.c.l.b16 %v687
        %v1678 = vpack.c.b16 %v1675, %v1674
        %v1679 = vpack.c.b16 %v1677, %v1676
        %v1681 = vsel %vm995, %v1678, 0
        %v1684 = vsel %vm995, %v1679, 0
        %1686 = vmatprep.subr.bf16.mxu0 %v1647
        %1687 = vmatpush1.bf16.msra.mxu0 %v1646
        %1688 = vmatprep.subr.bf16.mxu0 %v1649
        %1689 = vmatpush1.bf16.msra.mxu0 %v1648
        %1690 = vmatprep.subr.bf16.mxu0 0
        %1691 = vmatpush1.bf16.msra.mxu0 0
        %1692 = vmatprep.subr.bf16.mxu0 0
        %1693 = vmatpush1.bf16.msra.mxu0 0
        %1694 = vmatprep.subr.bf16.mxu0 0
        %1695 = vmatpush1.bf16.msra.mxu0 0
        %1696 = vmatprep.subr.bf16.mxu0 0
        %1697 = vmatpush1.bf16.msra.mxu0 0
        %1698 = vmatprep.subr.bf16.mxu0 0
        %1699 = vmatpush1.bf16.msra.mxu0 0
        %1700 = vmatprep.subr.bf16.mxu0 0
        %1701 = vmatpush1.bf16.msra.mxu0 0
        %1702 = vmatprep.subr.bf16.mxu0 0
        %1703 = vmatpush1.bf16.msra.mxu0 0
        %1704 = vmatprep.subr.bf16.mxu0 0
        %1705 = vmatpush1.bf16.msra.mxu0 0
        %1706 = vmatprep.subr.bf16.mxu0 0
        %1707 = vmatpush1.bf16.msra.mxu0 0
        %1708 = vmatprep.subr.bf16.mxu0 0
        %1709 = vmatpush1.bf16.msra.mxu0 0
        %1710 = vmatprep.subr.bf16.mxu0 0
        %1711 = vmatpush1.bf16.msra.mxu0 0
        %1712 = vmatprep.subr.bf16.mxu0 0
        %1713 = vmatpush1.bf16.msra.mxu0 0
        %1714 = vmatprep.subr.bf16.mxu0 0
        %1715 = vmatpush1.bf16.msra.mxu0 0
        %1716 = vmatprep.subr.bf16.mxu0 0
        %1717 = vmatpush1.bf16.msra.mxu0 0
        %1718 = vmatprep.mubr.bf16.mxu0 0
        %1719 = vmatmul.mubr.bf16.gmra.mrb[0].mxu0 %v1681
        %v1720 = vpop.f32.mrb[0].mxu0
        %v1721 = vadd.f32 %v1653, %v1720
        %v1722 = vpop.f32.mrb[0].mxu0
        %v1723 = vadd.f32 %v1653, %v1722
        %v1724 = vpop.f32.mrb[0].mxu0
        %v1725 = vadd.f32 %v1658, %v1724
        %v1726 = vpop.f32.mrb[0].mxu0
        %v1727 = vadd.f32 %v1658, %v1726
        %1728 = vmatprep.mubr.bf16.mxu0 0
        %1729 = vmatmul.mubr.bf16.gmra.mrb[0].mxu0 %v1684
        %v1730 = vpop.f32.mrb[0].mxu0
        %v1731 = vadd.f32 %v1663, %v1730
        %v1732 = vpop.f32.mrb[0].mxu0
        %v1733 = vadd.f32 %v1663, %v1732
        %v1734 = vpop.f32.mrb[0].mxu0
        %v1735 = vadd.f32 %v1668, %v1734
        %v1736 = vpop.f32.mrb[0].mxu0
        %v1737 = vadd.f32 %v1668, %v1736
        %1738 = vdwg.mxu0
        %v1739 = vmax.f32 %v1721, 0.0
        %v1740 = vmax.f32 %v1723, 0.0
        %v1741 = vmax.f32 %v1725, 0.0
        %v1742 = vmax.f32 %v1727, 0.0
        %v1743 = vmax.f32 %v1731, 0.0
        %v1744 = vmax.f32 %v1733, 0.0
        %v1745 = vmax.f32 %v1735, 0.0
        %v1746 = vmax.f32 %v1737, 0.0
        %v1747 = vpack.c.bf16 %v1741, %v1739
        %v1748 = vpack.c.bf16 %v1742, %v1740
        %v1749 = vpack.c.bf16 %v1745, %v1743
        %v1750 = vpack.c.bf16 %v1746, %v1744
        %1752 = vset.pattern.permute.xlu0 0
        %1753 = vperm.xlu0 %1752, %v693
        %v1754 = vpop.permute.xlu0 %1753
        %v1757 = vsel %vm995, %v692, 0
        %1759 = vmatprep.subr.bf16.mxu0 %v1748
        %1760 = vmatpush1.bf16.msra.mxu0 %v1747
        %1761 = vmatprep.subr.bf16.mxu0 %v1750
        %1762 = vmatpush1.bf16.msra.mxu0 %v1749
        %1763 = vmatprep.subr.bf16.mxu0 0
        %1764 = vmatpush1.bf16.msra.mxu0 0
        %1765 = vmatprep.subr.bf16.mxu0 0
        %1766 = vmatpush1.bf16.msra.mxu0 0
        %1767 = vmatprep.subr.bf16.mxu0 0
        %1768 = vmatpush1.bf16.msra.mxu0 0
        %1769 = vmatprep.subr.bf16.mxu0 0
        %1770 = vmatpush1.bf16.msra.mxu0 0
        %1771 = vmatprep.subr.bf16.mxu0 0
        %1772 = vmatpush1.bf16.msra.mxu0 0
        %1773 = vmatprep.subr.bf16.mxu0 0
        %1774 = vmatpush1.bf16.msra.mxu0 0
        %1775 = vmatprep.subr.bf16.mxu0 0
        %1776 = vmatpush1.bf16.msra.mxu0 0
        %1777 = vmatprep.subr.bf16.mxu0 0
        %1778 = vmatpush1.bf16.msra.mxu0 0
        %1779 = vmatprep.subr.bf16.mxu0 0
        %1780 = vmatpush1.bf16.msra.mxu0 0
        %1781 = vmatprep.subr.bf16.mxu0 0
        %1782 = vmatpush1.bf16.msra.mxu0 0
        %1783 = vmatprep.subr.bf16.mxu0 0
        %1784 = vmatpush1.bf16.msra.mxu0 0
        %1785 = vmatprep.subr.bf16.mxu0 0
        %1786 = vmatpush1.bf16.msra.mxu0 0
        %1787 = vmatprep.subr.bf16.mxu0 0
        %1788 = vmatpush1.bf16.msra.mxu0 0
        %1789 = vmatprep.subr.bf16.mxu0 0
        %1790 = vmatpush1.bf16.msra.mxu0 0
        %1791 = vmatprep.mubr.bf16.mxu0 0
        %1792 = vmatmul.mubr.bf16.gmra.mrb[0].mxu0 %v1757
        %v1793 = vpop.f32.mrb[0].mxu0
        %v1794 = vadd.f32 %v1754, %v1793
        %v1795 = vpop.f32.mrb[0].mxu0
        %v1796 = vadd.f32 %v1754, %v1795
        %v1797 = vpop.f32.mrb[0].mxu0
        %v1798 = vpop.f32.mrb[0].mxu0
        %1799 = vdwg.mxu0
        %v1800 = vxor.u32 %v1794, 2147483648
        %v1801 = vxor.u32 %v1796, 2147483648
        %v1802 = vmul.f32 %v1800, 1.442695
        %v1803 = vpow.pop %v1802
        %v1804 = vmul.f32 %v1801, 1.442695
        %v1805 = vpow.pop %v1804
        %v1806 = vadd.f32 %v1803, 1.0
        %v1807 = vadd.f32 %v1805, 1.0
        %v1808 = vrcp.pop %v1806
        %v1809 = vmul.f32 1.0, %v1808
        %v1810 = vrcp.pop %v1807
        %v1811 = vmul.f32 1.0, %v1810
        %v1814 = vcombine.low %v1476, %v1477
        %v1816 = vunpack.c.l.s4 1966171168
        %v1817 = vunpack.c.0.s8 %v1816
        %v1818 = vlaneseq
        %v1819 = vshrl.u32 %v1818, 7
        %v1820 = vsub.s32 %v1817, %v1819
        %v1821 = vrot.slane %v1814, %v1820
        %v1823 = vunpack.c.l.s4 1966171168
        %v1824 = vunpack.c.0.s8 %v1823
        %v1825 = vlaneseq
        %v1826 = vshrl.u32 %v1825, 7
        %v1827 = vsub.s32 %v1824, %v1826
        %v1828 = vrot.slane %v1821, %v1827
        %v1830 = vlaneseq
        %vm1831 = vcmp.ge.s32.totalorder %v1830, 0
        %vm1832 = vcmp.lt.s32.totalorder %v1830, 256
        %vm1833 = vmand %vm1831, %vm1832
        %1834 = vst.msk [vmem:[%s616] sm:$0x3] %vm1833, %v1828
        %v1837 = vcombine.low %v1809, %v1811
        %1839 = vst [vmem:[%s623] sm:$0x77] %v1837
        %v1840 = vcombine.low %v1504, %v1505
        %1842 = vst [vmem:[%s630] sm:$0x77] %v1840
        %s1843 = sand.u32 %s412, 1
        %s1844 = scalar_lea.sflag [#allocation4], %s1843
        %s1845 = sand.u32 %s412, 1
        %s1846 = smul.addr %s1845, 2
        %s1847 = scalar_lea.vmem [#allocation3], %s1846
        %s1848 = sand.u32 %s37, 1
        %s1849 = scalar_lea.sflag [#allocation6], %s1848
        %s1850 = sand.u32 %s438, 1
        %s1851 = smul.addr %s1850, 8
        %s1852 = scalar_lea.vmem [#allocation5], %s1851
        %s1853 = sand.u32 %s37, 1
        %s1854 = scalar_lea.sflag [#allocation6], %s1853
        %s1855 = sand.u32 %s464, 1
        %s1856 = smul.addr %s1855, 8
        %s1857 = scalar_lea.vmem [#allocation7], %s1856
        // Predicated region
        $region89: #{tpu_custom_call.1} parent=87 // pred_check
          %p1858 = pneg %p422
        $region90: #{tpu_custom_call.1} parent=87 // pred_check_branch
          %1860 = sbr.rel (%p1858) target = $region92
        $region91: #{tpu_custom_call.1} parent=87 // pred_region
          %s1861 = smul.u32 2, %s37
          %s1863 = ssub.s32 32, 32
          %1864 = vsyncadd %s1844, %s1863
          %s1865 = smul.addr %s1861, 16
          %s1866 = scalar_lea.hbm %s17, %s1865
          %s1868 = sshll.u32 %s1847, 4
          %s1869 = int_to_ptr.vmem [resolvable:$true] %s1868
          %1871 = dma.vmem_to_hbm [thread:$0]  %s1869, 32, %s1866, %s1844
        $region92: #{tpu_custom_call.1} parent=87 // pred_fallthru
          _
        // Predicated region
        $region93: #{tpu_custom_call.1} parent=87 // pred_check
          %p1872 = pneg %p448
        $region94: #{tpu_custom_call.1} parent=87 // pred_check_branch
          %1874 = sbr.rel (%p1872) target = $region96
        $region95: #{tpu_custom_call.1} parent=87 // pred_region
          %s1875 = smul.u32 2, %s37
          %s1877 = ssub.s32 128, 128
          %1878 = vsyncadd %s1849, %s1877
          %s1879 = smul.addr %s1875, 64
          %s1880 = scalar_lea.hbm %s18, %s1879
          %s1882 = sshll.u32 %s1852, 4
          %s1883 = int_to_ptr.vmem [resolvable:$true] %s1882
          %1885 = dma.vmem_to_hbm [thread:$0]  %s1883, 128, %s1880, %s1849
        $region96: #{tpu_custom_call.1} parent=87 // pred_fallthru
          _
        // Predicated region
        $region97: #{tpu_custom_call.1} parent=87 // pred_check
          %p1886 = pneg %p474
        $region98: #{tpu_custom_call.1} parent=87 // pred_check_branch
          %1888 = sbr.rel (%p1886) target = $region100
        $region99: #{tpu_custom_call.1} parent=87 // pred_region
          %s1889 = smul.u32 2, %s37
          %s1891 = ssub.s32 128, 128
          %1892 = vsyncadd %s1854, %s1891
          %s1893 = smul.addr %s1889, 64
          %s1894 = scalar_lea.hbm %s19, %s1893
          %s1896 = sshll.u32 %s1857, 4
          %s1897 = int_to_ptr.vmem [resolvable:$true] %s1896
          %1899 = dma.vmem_to_hbm [thread:$0]  %s1897, 128, %s1894, %s1854
        $region100: #{tpu_custom_call.1} parent=87 // pred_fallthru
          _
      $region88: #{tpu_custom_call.1} parent=5 // pred_fallthru
        _
      %p1900 = scmp.le.s32.totalorder 2, %s32
      // Predicated region
      $region101: #{tpu_custom_call.1} parent=5 // pred_check
        %p1901 = pneg %p1900
      $region102: #{tpu_custom_call.1} parent=5 // pred_check_branch
        %1903 = sbr.rel (%p1901) target = $region104
      $region103: #{tpu_custom_call.1} parent=5 // pred_region
        %s1904 = ssub.s32 %s32, 2
        // Predicated region
        $region105: #{tpu_custom_call.1} parent=103 // pred_check
          %p1905 = pneg %p428
        $region106: #{tpu_custom_call.1} parent=103 // pred_check_branch
          %1907 = sbr.rel (%p1905) target = $region108
        $region107: #{tpu_custom_call.1} parent=103 // pred_region
          %s1908 = sand.u32 %s413, 1
          %s1909 = scalar_lea.sflag [#allocation4], %s1908
          %s1910 = sand.u32 %s413, 1
          %s1911 = smul.addr %s1910, 2
          %s1912 = scalar_lea.vmem [#allocation3], %s1911
          %1913 = dma.done %s1909, 32
        $region108: #{tpu_custom_call.1} parent=103 // pred_fallthru
          _
        // Predicated region
        $region109: #{tpu_custom_call.1} parent=103 // pred_check
          %p1914 = pneg %p454
        $region110: #{tpu_custom_call.1} parent=103 // pred_check_branch
          %1916 = sbr.rel (%p1914) target = $region112
        $region111: #{tpu_custom_call.1} parent=103 // pred_region
          %s1917 = sand.u32 %s38, 1
          %s1918 = scalar_lea.sflag [#allocation6], %s1917
          %s1919 = sand.u32 %s439, 1
          %s1920 = smul.addr %s1919, 8
          %s1921 = scalar_lea.vmem [#allocation5], %s1920
          %1922 = dma.done %s1918, 128
        $region112: #{tpu_custom_call.1} parent=103 // pred_fallthru
          _
        // Predicated region
        $region113: #{tpu_custom_call.1} parent=103 // pred_check
          %p1923 = pneg %p480
        $region114: #{tpu_custom_call.1} parent=103 // pred_check_branch
          %1925 = sbr.rel (%p1923) target = $region116
        $region115: #{tpu_custom_call.1} parent=103 // pred_region
          %s1926 = sand.u32 %s38, 1
          %s1927 = scalar_lea.sflag [#allocation6], %s1926
          %s1928 = sand.u32 %s465, 1
          %s1929 = smul.addr %s1928, 8
          %s1930 = scalar_lea.vmem [#allocation7], %s1929
          %1931 = dma.done %s1927, 128
        $region116: #{tpu_custom_call.1} parent=103 // pred_fallthru
          _
      $region104: #{tpu_custom_call.1} parent=5 // pred_fallthru
        _
    $region6: #{tpu_custom_call.1} parent=1 // loop_footer
      %s36 = sadd.s32 1, %s32
    $region7: #{tpu_custom_call.1} parent=1 // loop_footer_branch
      %31 = sbr.rel target = $region3
    $region8: #{tpu_custom_call.1} parent=1 // loop_exit
      _
    %1932 = vsyncpa [#allocation4], 1
    %s1933 = scalar_lea.sflag [#allocation4], 1
    %1934 = vsyncpa %s1933, 1
    %1935 = vsyncpa [#allocation6], 1
    %s1936 = scalar_lea.sflag [#allocation6], 1
    %1937 = vsyncpa %s1936, 1

</llo_original>
